<compile_context>
chip_gen: v5e
topology: v5e:2x2
jax: 0.10.0
libtpu: 0.0.40
codegen_flags: <defaults>
</compile_context>

<pallas_src>
import functools
import math

import jax
import jax.numpy as jnp
from jax.experimental import pallas as pl
from jax.experimental.pallas import tpu as pltpu

_LEAKY_SLOPE = 0.01          # torch.nn.LeakyReLU default
_SOFTPLUS_THRESHOLD = 20.0   # torch.nn.Softplus(beta=1) default
_H1, _H2, _H3 = 256, 128, 64  # hidden widths from the PyTorch module


def _fused_actor_kernel(x_ref, w1c_ref, b1c_ref, w2_ref, w3_ref, w4_ref,
                        brest_ref, out_ref, *, param_dims):
    """One pipeline step: all branches, all four layers, for one batch tile."""
    neg = jnp.float32(_LEAKY_SLOPE)
    thr = jnp.float32(_SOFTPLUS_THRESHOLD)
    n_branches = w2_ref.shape[0]
    out_pad = out_ref.shape[2]

    def leaky(h):
        # slope < 1 => LeakyReLU == max(h, slope*h): one VALU max, no select.
        return jnp.maximum(h, neg * h)

    x = x_ref[...]                                              # (TB, obs) f32

    # ---- layer 1: one lane-wide matmul shared across every branch ----------
    h1_all = jnp.dot(x, w1c_ref[...],
                     preferred_element_type=jnp.float32) + b1c_ref[...]
    h1_all = leaky(h1_all)                                      # (TB, n_br*256)

    # ---- layers 2-4 per branch, statically unrolled -------------------------
    for b in range(n_branches):                                 # trace-time loop
        h = h1_all[:, b * _H1:(b + 1) * _H1]                    # 128-aligned slice
        h = jnp.dot(h, w2_ref[b],
                    preferred_element_type=jnp.float32) + brest_ref[b, 0:1, :_H2]
        h = leaky(h)                                            # (TB, 128)
        h = jnp.dot(h, w3_ref[b],
                    preferred_element_type=jnp.float32) + brest_ref[b, 1:2, :_H3]
        h = leaky(h)                                            # (TB, 64)
        y = jnp.dot(h, w4_ref[b],
                    preferred_element_type=jnp.float32) + brest_ref[b, 2:3, :]

        if b % 2 == 1:                                          # std branch
            # Softplus (beta=1, threshold=20); log(1+exp) kept explicit for
            # Mosaic-friendly lowering, same formula used by the reference.
            sp = jnp.where(y > thr, y,
                           jnp.log(1.0 + jnp.exp(jnp.minimum(y, thr))))
            pd = param_dims[b // 2]
            if pd < out_pad:
                # keep the zero-padded lanes zero (not softplus(0)=ln2)
                lane = jax.lax.broadcasted_iota(jnp.int32, (1, out_pad), 1)
                sp = jnp.where(lane < pd, sp, 0.0)
            y = sp

        out_ref[b] = y                                          # lane-dense store


def _fused_pallas_forward(params, x, param_dims):
    w1c, b1c = params["w1c"], params["b1c"]
    w2, w3, w4, brest = params["w2"], params["w3"], params["w4"], params["brest"]
    obs_dim = w1c.shape[0]
    n_branches = w2.shape[0]
    out_pad = w4.shape[2]
    B = x.shape[0]

    # Batch tiling: single step for small batches, 512-row tiles for large ones.
    if B <= 512:
        b_pad = max(8, -(-B // 8) * 8)
        tile_b = b_pad
    else:
        tile_b = 512
        b_pad = -(-B // tile_b) * tile_b
    if b_pad != B:
        x = jnp.pad(x, ((0, b_pad - B), (0, 0)))
    grid = (b_pad // tile_b,)

    cost = pl.CostEstimate(
        flops=2 * b_pad * (obs_dim * _H1 + _H1 * _H2 + _H2 * _H3 + _H3 * out_pad)
              * n_branches,
        transcendentals=b_pad * out_pad * (n_branches // 2),    # Softplus exp/log
        bytes_accessed=4 * int(x.size + w1c.size + b1c.size + w2.size + w3.size
                               + w4.size + brest.size
                               + n_branches * b_pad * out_pad),
    )

    slab = pl.pallas_call(
        functools.partial(_fused_actor_kernel, param_dims=param_dims),
        out_shape=jax.ShapeDtypeStruct((n_branches, b_pad, out_pad), jnp.float32),
        grid=grid,
        in_specs=[
            # x: one batch tile per grid step
            pl.BlockSpec((tile_b, obs_dim), lambda i: (i, 0)),
            # weights/biases: full arrays, constant index map -> VMEM-resident
            pl.BlockSpec(w1c.shape, lambda i: (0, 0)),
            pl.BlockSpec(b1c.shape, lambda i: (0, 0)),
            pl.BlockSpec(w2.shape, lambda i: (0, 0, 0)),
            pl.BlockSpec(w3.shape, lambda i: (0, 0, 0)),
            pl.BlockSpec(w4.shape, lambda i: (0, 0, 0)),
            pl.BlockSpec(brest.shape, lambda i: (0, 0, 0)),
        ],
        out_specs=pl.BlockSpec((n_branches, tile_b, out_pad), lambda i: (0, i, 0)),
        # Scheduling hint only: batch tiles are independent. No claim of a
        # v7x cross-TC split (that would need CORE_PARALLEL and a large B).
        compiler_params=pltpu.CompilerParams(
            dimension_semantics=("parallel",)),
        cost_estimate=cost,
    )(x, w1c, b1c, w2, w3, w4, brest)
    return slab


@functools.partial(jax.jit, static_argnames=("param_dims",))
def actor_forward(params, x, param_dims):
    """Whole forward under one jit: one fused pallas_call + output slicing."""
    x = jnp.asarray(x, jnp.float32)
    B = x.shape[0]
    slab = _fused_pallas_forward(params, x, param_dims)
    out = []
    for i, pd in enumerate(param_dims):
        out.append({"mean": slab[2 * i, :B, :pd],
                    "std":  slab[2 * i + 1, :B, :pd]})
    return out


# ----------------------- parameter construction -----------------------------

def _init_linear(key, fan_in, fan_out):
    """PyTorch-style uniform(-1/sqrt(fan_in), 1/sqrt(fan_in)) init."""
    kw, kb = jax.random.split(key)
    bound = 1.0 / math.sqrt(fan_in)
    w = jax.random.uniform(kw, (fan_in, fan_out), jnp.float32, -bound, bound)
    b = jax.random.uniform(kb, (1, fan_out), jnp.float32, -bound, bound)
    return w, b


class ContinuousActorPallas:
    """JAX/Pallas equivalent of the PyTorch ContinuousActor (forward only)."""
    # TODO(synk): torch-style save()/load() checkpoint I/O not implemented
    # (file I/O, not part of the forward pass).

    def __init__(self, obs_dim=20, continuous_param_dim=(4, 4, 4),
                 control_type=None, key=None):
        if control_type is not None and control_type == "pendulum":
            obs_dim = 3
            continuous_param_dim = (1,)
        if key is None:
            key = jax.random.PRNGKey(0)
        self.obs_dim = obs_dim
        self.param_dims = tuple(int(p) for p in continuous_param_dim)
        max_pd = max(self.param_dims)
        self.out_pad = 128 * (-(-max_pd // 128))     # round up to 128 lanes

        # Branch order: [head0_mean, head0_std, head1_mean, head1_std, ...]
        branches = []
        for pd in self.param_dims:
            for _ in ("mean", "std"):
                key, k = jax.random.split(key)
                ks = jax.random.split(k, 4)
                l1 = _init_linear(ks[0], obs_dim, _H1)
                l2 = _init_linear(ks[1], _H1, _H2)
                l3 = _init_linear(ks[2], _H2, _H3)
                w4, b4 = _init_linear(ks[3], _H3, pd)
                # Zero-pad the final layer to a lane-dense (multiple of 128) width.
                w4 = jnp.pad(w4, ((0, 0), (0, self.out_pad - pd)))
                b4 = jnp.pad(b4, ((0, 0), (0, self.out_pad - pd)))
                branches.append((l1, l2, l3, (w4, b4)))

        def pad_lanes(b, width):
            return jnp.pad(b, ((0, 0), (0, width - b.shape[1])))

        # Layer-1 weights concatenated along the output axis -> one wide matmul.
        w1c = jnp.concatenate([br[0][0] for br in branches], axis=1)
        b1c = jnp.concatenate([br[0][1] for br in branches], axis=1)
        w2 = jnp.stack([br[1][0] for br in branches])        # (n_br, 256, 128)
        w3 = jnp.stack([br[2][0] for br in branches])        # (n_br, 128, 64)
        w4 = jnp.stack([br[3][0] for br in branches])        # (n_br, 64, out_pad)
        # Layers 2-4 biases consolidated into one (n_br, 3, out_pad) array.
        brest = jnp.stack([
            jnp.concatenate([pad_lanes(br[1][1], self.out_pad),
                             pad_lanes(br[2][1], self.out_pad),
                             pad_lanes(br[3][1], self.out_pad)], axis=0)
            for br in branches])

        # All f32: matches the all-f32 PyTorch model; total ~1.3 MB, trivially
        # VMEM-resident on every TPU generation (incl. v7x's 64 MiB).
        self.params = {"w1c": w1c, "b1c": b1c,
                       "w2": w2, "w3": w3, "w4": w4, "brest": brest}

    def __call__(self, x):
        return actor_forward(self.params, x, param_dims=self.param_dims)


# ----------------------------- reference & test ------------------------------

def _reference_forward(params, x, param_dims):
    """Pure-jnp reference (no Pallas) with identical f32 math."""
    x = jnp.asarray(x, jnp.float32)
    n_branches = params["w2"].shape[0]
    h1_all = x @ params["w1c"] + params["b1c"]
    h1_all = jnp.maximum(h1_all, _LEAKY_SLOPE * h1_all)
    slabs = []
    for b in range(n_branches):
        h = h1_all[:, b * _H1:(b + 1) * _H1]
        h = h @ params["w2"][b] + params["brest"][b, 0:1, :_H2]
        h = jnp.maximum(h, _LEAKY_SLOPE * h)
        h = h @ params["w3"][b] + params["brest"][b, 1:2, :_H3]
        h = jnp.maximum(h, _LEAKY_SLOPE * h)
        y = h @ params["w4"][b] + params["brest"][b, 2:3, :]
        if b % 2 == 1:
            y = jnp.where(y > _SOFTPLUS_THRESHOLD, y,
                          jnp.log(1.0 + jnp.exp(jnp.minimum(y, _SOFTPLUS_THRESHOLD))))
        slabs.append(y)
    out = []
    for i, pd in enumerate(param_dims):
        out.append({"mean": slabs[2 * i][:, :pd],
                    "std":  slabs[2 * i + 1][:, :pd]})
    return out


if __name__ == "__main__":
    key = jax.random.PRNGKey(0)
    k_in, k_params = jax.random.split(key)

    B, OBS_DIM = 8, 20
    x = jax.random.normal(k_in, (B, OBS_DIM), jnp.float32)

    actor = ContinuousActorPallas(obs_dim=OBS_DIM,
                                  continuous_param_dim=(4, 4, 4),
                                  key=k_params)

    outputs = jax.block_until_ready(actor(x))
    refs = jax.block_until_ready(
        _reference_forward(actor.params, x, actor.param_dims))

    ok = True
    for head_out, head_ref in zip(outputs, refs):
        mean, std = head_out["mean"], head_out["std"]
        ok &= mean.shape == (B, 4) and std.shape == (B, 4)
        ok &= bool(jnp.all(jnp.isfinite(mean))) and bool(jnp.all(jnp.isfinite(std)))
        ok &= bool(jnp.all(std >= 0.0))  # Softplus output is non-negative
        ok &= bool(jnp.allclose(mean, head_ref["mean"], atol=2e-2, rtol=2e-2))
        ok &= bool(jnp.allclose(std, head_ref["std"], atol=2e-2, rtol=2e-2))

    print("KERNEL_OK" if ok else "KERNEL_FAILED")
</pallas_src>

<mosaic_0001>
module attributes {stable_mosaic.version = 11 : i64} {
  func.func @_fused_actor_kernel(%arg0: i32, %arg1: memref<8x20xf32, #tpu.memory_space<vmem>>, %arg2: memref<20x1536xf32, #tpu.memory_space<vmem>>, %arg3: memref<1x1536xf32, #tpu.memory_space<vmem>>, %arg4: memref<6x256x128xf32, #tpu.memory_space<vmem>>, %arg5: memref<6x128x64xf32, #tpu.memory_space<vmem>>, %arg6: memref<6x64x128xf32, #tpu.memory_space<vmem>>, %arg7: memref<6x3x128xf32, #tpu.memory_space<vmem>>, %arg8: memref<6x8x128xf32, #tpu.memory_space<vmem>>) attributes {dimension_semantics = [#tpu.dimension_semantics<parallel>], iteration_bounds = array<i64: 1>, scalar_prefetch = 0 : i64, scratch_operands = 0 : i64, tpu.core_type = #tpu.core_type<tc>, window_params = [{transform_indices = @transform_0, window_bounds = array<i64: 8, 20>}, {pipeline_mode = #tpu.pipeline_mode<synchronous>, transform_indices = @transform_1, window_bounds = array<i64: 20, 1536>}, {pipeline_mode = #tpu.pipeline_mode<synchronous>, transform_indices = @transform_2, window_bounds = array<i64: 1, 1536>}, {pipeline_mode = #tpu.pipeline_mode<synchronous>, transform_indices = @transform_3, window_bounds = array<i64: 6, 256, 128>}, {pipeline_mode = #tpu.pipeline_mode<synchronous>, transform_indices = @transform_4, window_bounds = array<i64: 6, 128, 64>}, {pipeline_mode = #tpu.pipeline_mode<synchronous>, transform_indices = @transform_5, window_bounds = array<i64: 6, 64, 128>}, {pipeline_mode = #tpu.pipeline_mode<synchronous>, transform_indices = @transform_6, window_bounds = array<i64: 6, 3, 128>}, {transform_indices = @transform_7, window_bounds = array<i64: 6, 8, 128>}]} {
    %c0 = arith.constant 0 : index
    %c0_0 = arith.constant 0 : index
    %0 = vector.load %arg1[%c0, %c0_0] : memref<8x20xf32, #tpu.memory_space<vmem>>, vector<8x20xf32>
    %c0_1 = arith.constant 0 : index
    %c0_2 = arith.constant 0 : index
    %1 = vector.load %arg2[%c0_1, %c0_2] : memref<20x1536xf32, #tpu.memory_space<vmem>>, vector<20x1536xf32>
    %cst = arith.constant dense<0.000000e+00> : vector<8x1536xf32>
    %2 = tpu.matmul %0, %1, %cst {dimension_numbers = #tpu.dot_dimension_numbers<[1], [0], [0], [1], [0, 0, 1, 1], [], []>} : vector<8x20xf32>, vector<20x1536xf32>, vector<8x1536xf32> -> vector<8x1536xf32>
    %c0_3 = arith.constant 0 : index
    %c0_4 = arith.constant 0 : index
    %3 = vector.load %arg3[%c0_3, %c0_4] : memref<1x1536xf32, #tpu.memory_space<vmem>>, vector<1x1536xf32>
    %4 = vector.broadcast %3 : vector<1x1536xf32> to vector<8x1536xf32>
    %5 = arith.addf %2, %4 : vector<8x1536xf32>
    %cst_5 = arith.constant 0.00999999977 : f32
    %6 = vector.broadcast %cst_5 : f32 to vector<8x1536xf32>
    %7 = arith.mulf %6, %5 : vector<8x1536xf32>
    %8 = arith.maximumf %5, %7 : vector<8x1536xf32>
    %9 = vector.extract_strided_slice %8 {offsets = [0, 0], sizes = [8, 256], strides = [1, 1]} : vector<8x1536xf32> to vector<8x256xf32>
    %c0_6 = arith.constant 0 : index
    %c0_7 = arith.constant 0 : index
    %c0_8 = arith.constant 0 : index
    %10 = vector.load %arg4[%c0_6, %c0_7, %c0_8] : memref<6x256x128xf32, #tpu.memory_space<vmem>>, vector<1x256x128xf32>
    %11 = vector.shape_cast %10 : vector<1x256x128xf32> to vector<256x128xf32>
    %cst_9 = arith.constant dense<0.000000e+00> : vector<8x128xf32>
    %12 = tpu.matmul %9, %11, %cst_9 {dimension_numbers = #tpu.dot_dimension_numbers<[1], [0], [0], [1], [0, 0, 1, 1], [], []>} : vector<8x256xf32>, vector<256x128xf32>, vector<8x128xf32> -> vector<8x128xf32>
    %c0_10 = arith.constant 0 : index
    %c0_11 = arith.constant 0 : index
    %c0_12 = arith.constant 0 : index
    %13 = vector.load %arg7[%c0_10, %c0_11, %c0_12] : memref<6x3x128xf32, #tpu.memory_space<vmem>>, vector<1x1x128xf32>
    %14 = vector.shape_cast %13 : vector<1x1x128xf32> to vector<1x128xf32>
    %15 = vector.broadcast %14 : vector<1x128xf32> to vector<8x128xf32>
    %16 = arith.addf %12, %15 : vector<8x128xf32>
    %cst_13 = arith.constant 0.00999999977 : f32
    %17 = vector.broadcast %cst_13 : f32 to vector<8x128xf32>
    %18 = arith.mulf %17, %16 : vector<8x128xf32>
    %19 = arith.maximumf %16, %18 : vector<8x128xf32>
    %c0_14 = arith.constant 0 : index
    %c0_15 = arith.constant 0 : index
    %c0_16 = arith.constant 0 : index
    %20 = vector.load %arg5[%c0_14, %c0_15, %c0_16] : memref<6x128x64xf32, #tpu.memory_space<vmem>>, vector<1x128x64xf32>
    %21 = vector.shape_cast %20 : vector<1x128x64xf32> to vector<128x64xf32>
    %cst_17 = arith.constant dense<0.000000e+00> : vector<8x64xf32>
    %22 = tpu.matmul %19, %21, %cst_17 {dimension_numbers = #tpu.dot_dimension_numbers<[1], [0], [0], [1], [0, 0, 1, 1], [], []>} : vector<8x128xf32>, vector<128x64xf32>, vector<8x64xf32> -> vector<8x64xf32>
    %c0_18 = arith.constant 0 : index
    %c1 = arith.constant 1 : index
    %c0_19 = arith.constant 0 : index
    %23 = vector.load %arg7[%c0_18, %c1, %c0_19] : memref<6x3x128xf32, #tpu.memory_space<vmem>>, vector<1x1x64xf32>
    %24 = vector.shape_cast %23 : vector<1x1x64xf32> to vector<1x64xf32>
    %25 = vector.broadcast %24 : vector<1x64xf32> to vector<8x64xf32>
    %26 = arith.addf %22, %25 : vector<8x64xf32>
    %cst_20 = arith.constant 0.00999999977 : f32
    %27 = vector.broadcast %cst_20 : f32 to vector<8x64xf32>
    %28 = arith.mulf %27, %26 : vector<8x64xf32>
    %29 = arith.maximumf %26, %28 : vector<8x64xf32>
    %c0_21 = arith.constant 0 : index
    %c0_22 = arith.constant 0 : index
    %c0_23 = arith.constant 0 : index
    %30 = vector.load %arg6[%c0_21, %c0_22, %c0_23] : memref<6x64x128xf32, #tpu.memory_space<vmem>>, vector<1x64x128xf32>
    %31 = vector.shape_cast %30 : vector<1x64x128xf32> to vector<64x128xf32>
    %cst_24 = arith.constant dense<0.000000e+00> : vector<8x128xf32>
    %32 = tpu.matmul %29, %31, %cst_24 {dimension_numbers = #tpu.dot_dimension_numbers<[1], [0], [0], [1], [0, 0, 1, 1], [], []>} : vector<8x64xf32>, vector<64x128xf32>, vector<8x128xf32> -> vector<8x128xf32>
    %c0_25 = arith.constant 0 : index
    %c2 = arith.constant 2 : index
    %c0_26 = arith.constant 0 : index
    %33 = vector.load %arg7[%c0_25, %c2, %c0_26] : memref<6x3x128xf32, #tpu.memory_space<vmem>>, vector<1x1x128xf32>
    %34 = vector.shape_cast %33 : vector<1x1x128xf32> to vector<1x128xf32>
    %35 = vector.broadcast %34 : vector<1x128xf32> to vector<8x128xf32>
    %36 = arith.addf %32, %35 : vector<8x128xf32>
    %c0_27 = arith.constant 0 : index
    %c0_28 = arith.constant 0 : index
    %c0_29 = arith.constant 0 : index
    %37 = vector.load %arg8[%c0_27, %c0_28, %c0_29] : memref<6x8x128xf32, #tpu.memory_space<vmem>>, vector<1x8x128xf32>
    %38 = vector.shape_cast %37 : vector<1x8x128xf32> to vector<8x128xf32>
    %39 = vector.shape_cast %36 : vector<8x128xf32> to vector<1x8x128xf32>
    tpu.vector_store %arg8[%c0_27, %c0_28, %c0_29], %39 {strides = array<i32>} : memref<6x8x128xf32, #tpu.memory_space<vmem>>, vector<1x8x128xf32>,
    %40 = vector.extract_strided_slice %8 {offsets = [0, 256], sizes = [8, 256], strides = [1, 1]} : vector<8x1536xf32> to vector<8x256xf32>
    %c1_30 = arith.constant 1 : index
    %c0_31 = arith.constant 0 : index
    %c0_32 = arith.constant 0 : index
    %41 = vector.load %arg4[%c1_30, %c0_31, %c0_32] : memref<6x256x128xf32, #tpu.memory_space<vmem>>, vector<1x256x128xf32>
    %42 = vector.shape_cast %41 : vector<1x256x128xf32> to vector<256x128xf32>
    %cst_33 = arith.constant dense<0.000000e+00> : vector<8x128xf32>
    %43 = tpu.matmul %40, %42, %cst_33 {dimension_numbers = #tpu.dot_dimension_numbers<[1], [0], [0], [1], [0, 0, 1, 1], [], []>} : vector<8x256xf32>, vector<256x128xf32>, vector<8x128xf32> -> vector<8x128xf32>
    %c1_34 = arith.constant 1 : index
    %c0_35 = arith.constant 0 : index
    %c0_36 = arith.constant 0 : index
    %44 = vector.load %arg7[%c1_34, %c0_35, %c0_36] : memref<6x3x128xf32, #tpu.memory_space<vmem>>, vector<1x1x128xf32>
    %45 = vector.shape_cast %44 : vector<1x1x128xf32> to vector<1x128xf32>
    %46 = vector.broadcast %45 : vector<1x128xf32> to vector<8x128xf32>
    %47 = arith.addf %43, %46 : vector<8x128xf32>
    %cst_37 = arith.constant 0.00999999977 : f32
    %48 = vector.broadcast %cst_37 : f32 to vector<8x128xf32>
    %49 = arith.mulf %48, %47 : vector<8x128xf32>
    %50 = arith.maximumf %47, %49 : vector<8x128xf32>
    %c1_38 = arith.constant 1 : index
    %c0_39 = arith.constant 0 : index
    %c0_40 = arith.constant 0 : index
    %51 = vector.load %arg5[%c1_38, %c0_39, %c0_40] : memref<6x128x64xf32, #tpu.memory_space<vmem>>, vector<1x128x64xf32>
    %52 = vector.shape_cast %51 : vector<1x128x64xf32> to vector<128x64xf32>
    %cst_41 = arith.constant dense<0.000000e+00> : vector<8x64xf32>
    %53 = tpu.matmul %50, %52, %cst_41 {dimension_numbers = #tpu.dot_dimension_numbers<[1], [0], [0], [1], [0, 0, 1, 1], [], []>} : vector<8x128xf32>, vector<128x64xf32>, vector<8x64xf32> -> vector<8x64xf32>
    %c1_42 = arith.constant 1 : index
    %c1_43 = arith.constant 1 : index
    %c0_44 = arith.constant 0 : index
    %54 = vector.load %arg7[%c1_42, %c1_43, %c0_44] : memref<6x3x128xf32, #tpu.memory_space<vmem>>, vector<1x1x64xf32>
    %55 = vector.shape_cast %54 : vector<1x1x64xf32> to vector<1x64xf32>
    %56 = vector.broadcast %55 : vector<1x64xf32> to vector<8x64xf32>
    %57 = arith.addf %53, %56 : vector<8x64xf32>
    %cst_45 = arith.constant 0.00999999977 : f32
    %58 = vector.broadcast %cst_45 : f32 to vector<8x64xf32>
    %59 = arith.mulf %58, %57 : vector<8x64xf32>
    %60 = arith.maximumf %57, %59 : vector<8x64xf32>
    %c1_46 = arith.constant 1 : index
    %c0_47 = arith.constant 0 : index
    %c0_48 = arith.constant 0 : index
    %61 = vector.load %arg6[%c1_46, %c0_47, %c0_48] : memref<6x64x128xf32, #tpu.memory_space<vmem>>, vector<1x64x128xf32>
    %62 = vector.shape_cast %61 : vector<1x64x128xf32> to vector<64x128xf32>
    %cst_49 = arith.constant dense<0.000000e+00> : vector<8x128xf32>
    %63 = tpu.matmul %60, %62, %cst_49 {dimension_numbers = #tpu.dot_dimension_numbers<[1], [0], [0], [1], [0, 0, 1, 1], [], []>} : vector<8x64xf32>, vector<64x128xf32>, vector<8x128xf32> -> vector<8x128xf32>
    %c1_50 = arith.constant 1 : index
    %c2_51 = arith.constant 2 : index
    %c0_52 = arith.constant 0 : index
    %64 = vector.load %arg7[%c1_50, %c2_51, %c0_52] : memref<6x3x128xf32, #tpu.memory_space<vmem>>, vector<1x1x128xf32>
    %65 = vector.shape_cast %64 : vector<1x1x128xf32> to vector<1x128xf32>
    %66 = vector.broadcast %65 : vector<1x128xf32> to vector<8x128xf32>
    %67 = arith.addf %63, %66 : vector<8x128xf32>
    %cst_53 = arith.constant 2.000000e+01 : f32
    %68 = vector.broadcast %cst_53 : f32 to vector<8x128xf32>
    %69 = arith.cmpf ogt, %67, %68 : vector<8x128xf32>
    %cst_54 = arith.constant 2.000000e+01 : f32
    %70 = vector.broadcast %cst_54 : f32 to vector<8x128xf32>
    %71 = arith.minimumf %67, %70 : vector<8x128xf32>
    %72 = math.exp %71 : vector<8x128xf32>
    %cst_55 = arith.constant 1.000000e+00 : f32
    %73 = vector.broadcast %cst_55 : f32 to vector<8x128xf32>
    %74 = arith.addf %73, %72 : vector<8x128xf32>
    %75 = math.log %74 : vector<8x128xf32>
    %76 = arith.select %69, %67, %75 : vector<8x128xi1>, vector<8x128xf32>
    %77 = tpu.iota {dimensions = array<i32: 1>} : vector<1x128xi32>
    %c4_i32 = arith.constant 4 : i32
    %78 = vector.broadcast %c4_i32 : i32 to vector<1x128xi32>
    %79 = arith.cmpi slt, %77, %78 : vector<1x128xi32>
    %cst_56 = arith.constant 0.000000e+00 : f32
    %80 = vector.shape_cast %79 : vector<1x128xi1> to vector<1x128xi1>
    %81 = vector.broadcast %80 : vector<1x128xi1> to vector<8x128xi1>
    %82 = vector.broadcast %cst_56 : f32 to vector<8x128xf32>
    %83 = arith.select %81, %76, %82 : vector<8x128xi1>, vector<8x128xf32>
    %c1_57 = arith.constant 1 : index
    %c0_58 = arith.constant 0 : index
    %c0_59 = arith.constant 0 : index
    %84 = vector.load %arg8[%c1_57, %c0_58, %c0_59] : memref<6x8x128xf32, #tpu.memory_space<vmem>>, vector<1x8x128xf32>
    %85 = vector.shape_cast %84 : vector<1x8x128xf32> to vector<8x128xf32>
    %86 = vector.shape_cast %83 : vector<8x128xf32> to vector<1x8x128xf32>
    tpu.vector_store %arg8[%c1_57, %c0_58, %c0_59], %86 {strides = array<i32>} : memref<6x8x128xf32, #tpu.memory_space<vmem>>, vector<1x8x128xf32>,
    %87 = vector.extract_strided_slice %8 {offsets = [0, 512], sizes = [8, 256], strides = [1, 1]} : vector<8x1536xf32> to vector<8x256xf32>
    %c2_60 = arith.constant 2 : index
    %c0_61 = arith.constant 0 : index
    %c0_62 = arith.constant 0 : index
    %88 = vector.load %arg4[%c2_60, %c0_61, %c0_62] : memref<6x256x128xf32, #tpu.memory_space<vmem>>, vector<1x256x128xf32>
    %89 = vector.shape_cast %88 : vector<1x256x128xf32> to vector<256x128xf32>
    %cst_63 = arith.constant dense<0.000000e+00> : vector<8x128xf32>
    %90 = tpu.matmul %87, %89, %cst_63 {dimension_numbers = #tpu.dot_dimension_numbers<[1], [0], [0], [1], [0, 0, 1, 1], [], []>} : vector<8x256xf32>, vector<256x128xf32>, vector<8x128xf32> -> vector<8x128xf32>
    %c2_64 = arith.constant 2 : index
    %c0_65 = arith.constant 0 : index
    %c0_66 = arith.constant 0 : index
    %91 = vector.load %arg7[%c2_64, %c0_65, %c0_66] : memref<6x3x128xf32, #tpu.memory_space<vmem>>, vector<1x1x128xf32>
    %92 = vector.shape_cast %91 : vector<1x1x128xf32> to vector<1x128xf32>
    %93 = vector.broadcast %92 : vector<1x128xf32> to vector<8x128xf32>
    %94 = arith.addf %90, %93 : vector<8x128xf32>
    %cst_67 = arith.constant 0.00999999977 : f32
    %95 = vector.broadcast %cst_67 : f32 to vector<8x128xf32>
    %96 = arith.mulf %95, %94 : vector<8x128xf32>
    %97 = arith.maximumf %94, %96 : vector<8x128xf32>
    %c2_68 = arith.constant 2 : index
    %c0_69 = arith.constant 0 : index
    %c0_70 = arith.constant 0 : index
    %98 = vector.load %arg5[%c2_68, %c0_69, %c0_70] : memref<6x128x64xf32, #tpu.memory_space<vmem>>, vector<1x128x64xf32>
    %99 = vector.shape_cast %98 : vector<1x128x64xf32> to vector<128x64xf32>
    %cst_71 = arith.constant dense<0.000000e+00> : vector<8x64xf32>
    %100 = tpu.matmul %97, %99, %cst_71 {dimension_numbers = #tpu.dot_dimension_numbers<[1], [0], [0], [1], [0, 0, 1, 1], [], []>} : vector<8x128xf32>, vector<128x64xf32>, vector<8x64xf32> -> vector<8x64xf32>
    %c2_72 = arith.constant 2 : index
    %c1_73 = arith.constant 1 : index
    %c0_74 = arith.constant 0 : index
    %101 = vector.load %arg7[%c2_72, %c1_73, %c0_74] : memref<6x3x128xf32, #tpu.memory_space<vmem>>, vector<1x1x64xf32>
    %102 = vector.shape_cast %101 : vector<1x1x64xf32> to vector<1x64xf32>
    %103 = vector.broadcast %102 : vector<1x64xf32> to vector<8x64xf32>
    %104 = arith.addf %100, %103 : vector<8x64xf32>
    %cst_75 = arith.constant 0.00999999977 : f32
    %105 = vector.broadcast %cst_75 : f32 to vector<8x64xf32>
    %106 = arith.mulf %105, %104 : vector<8x64xf32>
    %107 = arith.maximumf %104, %106 : vector<8x64xf32>
    %c2_76 = arith.constant 2 : index
    %c0_77 = arith.constant 0 : index
    %c0_78 = arith.constant 0 : index
    %108 = vector.load %arg6[%c2_76, %c0_77, %c0_78] : memref<6x64x128xf32, #tpu.memory_space<vmem>>, vector<1x64x128xf32>
    %109 = vector.shape_cast %108 : vector<1x64x128xf32> to vector<64x128xf32>
    %cst_79 = arith.constant dense<0.000000e+00> : vector<8x128xf32>
    %110 = tpu.matmul %107, %109, %cst_79 {dimension_numbers = #tpu.dot_dimension_numbers<[1], [0], [0], [1], [0, 0, 1, 1], [], []>} : vector<8x64xf32>, vector<64x128xf32>, vector<8x128xf32> -> vector<8x128xf32>
    %c2_80 = arith.constant 2 : index
    %c2_81 = arith.constant 2 : index
    %c0_82 = arith.constant 0 : index
    %111 = vector.load %arg7[%c2_80, %c2_81, %c0_82] : memref<6x3x128xf32, #tpu.memory_space<vmem>>, vector<1x1x128xf32>
    %112 = vector.shape_cast %111 : vector<1x1x128xf32> to vector<1x128xf32>
    %113 = vector.broadcast %112 : vector<1x128xf32> to vector<8x128xf32>
    %114 = arith.addf %110, %113 : vector<8x128xf32>
    %c2_83 = arith.constant 2 : index
    %c0_84 = arith.constant 0 : index
    %c0_85 = arith.constant 0 : index
    %115 = vector.load %arg8[%c2_83, %c0_84, %c0_85] : memref<6x8x128xf32, #tpu.memory_space<vmem>>, vector<1x8x128xf32>
    %116 = vector.shape_cast %115 : vector<1x8x128xf32> to vector<8x128xf32>
    %117 = vector.shape_cast %114 : vector<8x128xf32> to vector<1x8x128xf32>
    tpu.vector_store %arg8[%c2_83, %c0_84, %c0_85], %117 {strides = array<i32>} : memref<6x8x128xf32, #tpu.memory_space<vmem>>, vector<1x8x128xf32>,
    %118 = vector.extract_strided_slice %8 {offsets = [0, 768], sizes = [8, 256], strides = [1, 1]} : vector<8x1536xf32> to vector<8x256xf32>
    %c3 = arith.constant 3 : index
    %c0_86 = arith.constant 0 : index
    %c0_87 = arith.constant 0 : index
    %119 = vector.load %arg4[%c3, %c0_86, %c0_87] : memref<6x256x128xf32, #tpu.memory_space<vmem>>, vector<1x256x128xf32>
    %120 = vector.shape_cast %119 : vector<1x256x128xf32> to vector<256x128xf32>
    %cst_88 = arith.constant dense<0.000000e+00> : vector<8x128xf32>
    %121 = tpu.matmul %118, %120, %cst_88 {dimension_numbers = #tpu.dot_dimension_numbers<[1], [0], [0], [1], [0, 0, 1, 1], [], []>} : vector<8x256xf32>, vector<256x128xf32>, vector<8x128xf32> -> vector<8x128xf32>
    %c3_89 = arith.constant 3 : index
    %c0_90 = arith.constant 0 : index
    %c0_91 = arith.constant 0 : index
    %122 = vector.load %arg7[%c3_89, %c0_90, %c0_91] : memref<6x3x128xf32, #tpu.memory_space<vmem>>, vector<1x1x128xf32>
    %123 = vector.shape_cast %122 : vector<1x1x128xf32> to vector<1x128xf32>
    %124 = vector.broadcast %123 : vector<1x128xf32> to vector<8x128xf32>
    %125 = arith.addf %121, %124 : vector<8x128xf32>
    %cst_92 = arith.constant 0.00999999977 : f32
    %126 = vector.broadcast %cst_92 : f32 to vector<8x128xf32>
    %127 = arith.mulf %126, %125 : vector<8x128xf32>
    %128 = arith.maximumf %125, %127 : vector<8x128xf32>
    %c3_93 = arith.constant 3 : index
    %c0_94 = arith.constant 0 : index
    %c0_95 = arith.constant 0 : index
    %129 = vector.load %arg5[%c3_93, %c0_94, %c0_95] : memref<6x128x64xf32, #tpu.memory_space<vmem>>, vector<1x128x64xf32>
    %130 = vector.shape_cast %129 : vector<1x128x64xf32> to vector<128x64xf32>
    %cst_96 = arith.constant dense<0.000000e+00> : vector<8x64xf32>
    %131 = tpu.matmul %128, %130, %cst_96 {dimension_numbers = #tpu.dot_dimension_numbers<[1], [0], [0], [1], [0, 0, 1, 1], [], []>} : vector<8x128xf32>, vector<128x64xf32>, vector<8x64xf32> -> vector<8x64xf32>
    %c3_97 = arith.constant 3 : index
    %c1_98 = arith.constant 1 : index
    %c0_99 = arith.constant 0 : index
    %132 = vector.load %arg7[%c3_97, %c1_98, %c0_99] : memref<6x3x128xf32, #tpu.memory_space<vmem>>, vector<1x1x64xf32>
    %133 = vector.shape_cast %132 : vector<1x1x64xf32> to vector<1x64xf32>
    %134 = vector.broadcast %133 : vector<1x64xf32> to vector<8x64xf32>
    %135 = arith.addf %131, %134 : vector<8x64xf32>
    %cst_100 = arith.constant 0.00999999977 : f32
    %136 = vector.broadcast %cst_100 : f32 to vector<8x64xf32>
    %137 = arith.mulf %136, %135 : vector<8x64xf32>
    %138 = arith.maximumf %135, %137 : vector<8x64xf32>
    %c3_101 = arith.constant 3 : index
    %c0_102 = arith.constant 0 : index
    %c0_103 = arith.constant 0 : index
    %139 = vector.load %arg6[%c3_101, %c0_102, %c0_103] : memref<6x64x128xf32, #tpu.memory_space<vmem>>, vector<1x64x128xf32>
    %140 = vector.shape_cast %139 : vector<1x64x128xf32> to vector<64x128xf32>
    %cst_104 = arith.constant dense<0.000000e+00> : vector<8x128xf32>
    %141 = tpu.matmul %138, %140, %cst_104 {dimension_numbers = #tpu.dot_dimension_numbers<[1], [0], [0], [1], [0, 0, 1, 1], [], []>} : vector<8x64xf32>, vector<64x128xf32>, vector<8x128xf32> -> vector<8x128xf32>
    %c3_105 = arith.constant 3 : index
    %c2_106 = arith.constant 2 : index
    %c0_107 = arith.constant 0 : index
    %142 = vector.load %arg7[%c3_105, %c2_106, %c0_107] : memref<6x3x128xf32, #tpu.memory_space<vmem>>, vector<1x1x128xf32>
    %143 = vector.shape_cast %142 : vector<1x1x128xf32> to vector<1x128xf32>
    %144 = vector.broadcast %143 : vector<1x128xf32> to vector<8x128xf32>
    %145 = arith.addf %141, %144 : vector<8x128xf32>
    %cst_108 = arith.constant 2.000000e+01 : f32
    %146 = vector.broadcast %cst_108 : f32 to vector<8x128xf32>
    %147 = arith.cmpf ogt, %145, %146 : vector<8x128xf32>
    %cst_109 = arith.constant 2.000000e+01 : f32
    %148 = vector.broadcast %cst_109 : f32 to vector<8x128xf32>
    %149 = arith.minimumf %145, %148 : vector<8x128xf32>
    %150 = math.exp %149 : vector<8x128xf32>
    %cst_110 = arith.constant 1.000000e+00 : f32
    %151 = vector.broadcast %cst_110 : f32 to vector<8x128xf32>
    %152 = arith.addf %151, %150 : vector<8x128xf32>
    %153 = math.log %152 : vector<8x128xf32>
    %154 = arith.select %147, %145, %153 : vector<8x128xi1>, vector<8x128xf32>
    %155 = tpu.iota {dimensions = array<i32: 1>} : vector<1x128xi32>
    %c4_i32_111 = arith.constant 4 : i32
    %156 = vector.broadcast %c4_i32_111 : i32 to vector<1x128xi32>
    %157 = arith.cmpi slt, %155, %156 : vector<1x128xi32>
    %cst_112 = arith.constant 0.000000e+00 : f32
    %158 = vector.shape_cast %157 : vector<1x128xi1> to vector<1x128xi1>
    %159 = vector.broadcast %158 : vector<1x128xi1> to vector<8x128xi1>
    %160 = vector.broadcast %cst_112 : f32 to vector<8x128xf32>
    %161 = arith.select %159, %154, %160 : vector<8x128xi1>, vector<8x128xf32>
    %c3_113 = arith.constant 3 : index
    %c0_114 = arith.constant 0 : index
    %c0_115 = arith.constant 0 : index
    %162 = vector.load %arg8[%c3_113, %c0_114, %c0_115] : memref<6x8x128xf32, #tpu.memory_space<vmem>>, vector<1x8x128xf32>
    %163 = vector.shape_cast %162 : vector<1x8x128xf32> to vector<8x128xf32>
    %164 = vector.shape_cast %161 : vector<8x128xf32> to vector<1x8x128xf32>
    tpu.vector_store %arg8[%c3_113, %c0_114, %c0_115], %164 {strides = array<i32>} : memref<6x8x128xf32, #tpu.memory_space<vmem>>, vector<1x8x128xf32>,
    %165 = vector.extract_strided_slice %8 {offsets = [0, 1024], sizes = [8, 256], strides = [1, 1]} : vector<8x1536xf32> to vector<8x256xf32>
    %c4 = arith.constant 4 : index
    %c0_116 = arith.constant 0 : index
    %c0_117 = arith.constant 0 : index
    %166 = vector.load %arg4[%c4, %c0_116, %c0_117] : memref<6x256x128xf32, #tpu.memory_space<vmem>>, vector<1x256x128xf32>
    %167 = vector.shape_cast %166 : vector<1x256x128xf32> to vector<256x128xf32>
    %cst_118 = arith.constant dense<0.000000e+00> : vector<8x128xf32>
    %168 = tpu.matmul %165, %167, %cst_118 {dimension_numbers = #tpu.dot_dimension_numbers<[1], [0], [0], [1], [0, 0, 1, 1], [], []>} : vector<8x256xf32>, vector<256x128xf32>, vector<8x128xf32> -> vector<8x128xf32>
    %c4_119 = arith.constant 4 : index
    %c0_120 = arith.constant 0 : index
    %c0_121 = arith.constant 0 : index
    %169 = vector.load %arg7[%c4_119, %c0_120, %c0_121] : memref<6x3x128xf32, #tpu.memory_space<vmem>>, vector<1x1x128xf32>
    %170 = vector.shape_cast %169 : vector<1x1x128xf32> to vector<1x128xf32>
    %171 = vector.broadcast %170 : vector<1x128xf32> to vector<8x128xf32>
    %172 = arith.addf %168, %171 : vector<8x128xf32>
    %cst_122 = arith.constant 0.00999999977 : f32
    %173 = vector.broadcast %cst_122 : f32 to vector<8x128xf32>
    %174 = arith.mulf %173, %172 : vector<8x128xf32>
    %175 = arith.maximumf %172, %174 : vector<8x128xf32>
    %c4_123 = arith.constant 4 : index
    %c0_124 = arith.constant 0 : index
    %c0_125 = arith.constant 0 : index
    %176 = vector.load %arg5[%c4_123, %c0_124, %c0_125] : memref<6x128x64xf32, #tpu.memory_space<vmem>>, vector<1x128x64xf32>
    %177 = vector.shape_cast %176 : vector<1x128x64xf32> to vector<128x64xf32>
    %cst_126 = arith.constant dense<0.000000e+00> : vector<8x64xf32>
    %178 = tpu.matmul %175, %177, %cst_126 {dimension_numbers = #tpu.dot_dimension_numbers<[1], [0], [0], [1], [0, 0, 1, 1], [], []>} : vector<8x128xf32>, vector<128x64xf32>, vector<8x64xf32> -> vector<8x64xf32>
    %c4_127 = arith.constant 4 : index
    %c1_128 = arith.constant 1 : index
    %c0_129 = arith.constant 0 : index
    %179 = vector.load %arg7[%c4_127, %c1_128, %c0_129] : memref<6x3x128xf32, #tpu.memory_space<vmem>>, vector<1x1x64xf32>
    %180 = vector.shape_cast %179 : vector<1x1x64xf32> to vector<1x64xf32>
    %181 = vector.broadcast %180 : vector<1x64xf32> to vector<8x64xf32>
    %182 = arith.addf %178, %181 : vector<8x64xf32>
    %cst_130 = arith.constant 0.00999999977 : f32
    %183 = vector.broadcast %cst_130 : f32 to vector<8x64xf32>
    %184 = arith.mulf %183, %182 : vector<8x64xf32>
    %185 = arith.maximumf %182, %184 : vector<8x64xf32>
    %c4_131 = arith.constant 4 : index
    %c0_132 = arith.constant 0 : index
    %c0_133 = arith.constant 0 : index
    %186 = vector.load %arg6[%c4_131, %c0_132, %c0_133] : memref<6x64x128xf32, #tpu.memory_space<vmem>>, vector<1x64x128xf32>
    %187 = vector.shape_cast %186 : vector<1x64x128xf32> to vector<64x128xf32>
    %cst_134 = arith.constant dense<0.000000e+00> : vector<8x128xf32>
    %188 = tpu.matmul %185, %187, %cst_134 {dimension_numbers = #tpu.dot_dimension_numbers<[1], [0], [0], [1], [0, 0, 1, 1], [], []>} : vector<8x64xf32>, vector<64x128xf32>, vector<8x128xf32> -> vector<8x128xf32>
    %c4_135 = arith.constant 4 : index
    %c2_136 = arith.constant 2 : index
    %c0_137 = arith.constant 0 : index
    %189 = vector.load %arg7[%c4_135, %c2_136, %c0_137] : memref<6x3x128xf32, #tpu.memory_space<vmem>>, vector<1x1x128xf32>
    %190 = vector.shape_cast %189 : vector<1x1x128xf32> to vector<1x128xf32>
    %191 = vector.broadcast %190 : vector<1x128xf32> to vector<8x128xf32>
    %192 = arith.addf %188, %191 : vector<8x128xf32>
    %c4_138 = arith.constant 4 : index
    %c0_139 = arith.constant 0 : index
    %c0_140 = arith.constant 0 : index
    %193 = vector.load %arg8[%c4_138, %c0_139, %c0_140] : memref<6x8x128xf32, #tpu.memory_space<vmem>>, vector<1x8x128xf32>
    %194 = vector.shape_cast %193 : vector<1x8x128xf32> to vector<8x128xf32>
    %195 = vector.shape_cast %192 : vector<8x128xf32> to vector<1x8x128xf32>
    tpu.vector_store %arg8[%c4_138, %c0_139, %c0_140], %195 {strides = array<i32>} : memref<6x8x128xf32, #tpu.memory_space<vmem>>, vector<1x8x128xf32>,
    %196 = vector.extract_strided_slice %8 {offsets = [0, 1280], sizes = [8, 256], strides = [1, 1]} : vector<8x1536xf32> to vector<8x256xf32>
    %c5 = arith.constant 5 : index
    %c0_141 = arith.constant 0 : index
    %c0_142 = arith.constant 0 : index
    %197 = vector.load %arg4[%c5, %c0_141, %c0_142] : memref<6x256x128xf32, #tpu.memory_space<vmem>>, vector<1x256x128xf32>
    %198 = vector.shape_cast %197 : vector<1x256x128xf32> to vector<256x128xf32>
    %cst_143 = arith.constant dense<0.000000e+00> : vector<8x128xf32>
    %199 = tpu.matmul %196, %198, %cst_143 {dimension_numbers = #tpu.dot_dimension_numbers<[1], [0], [0], [1], [0, 0, 1, 1], [], []>} : vector<8x256xf32>, vector<256x128xf32>, vector<8x128xf32> -> vector<8x128xf32>
    %c5_144 = arith.constant 5 : index
    %c0_145 = arith.constant 0 : index
    %c0_146 = arith.constant 0 : index
    %200 = vector.load %arg7[%c5_144, %c0_145, %c0_146] : memref<6x3x128xf32, #tpu.memory_space<vmem>>, vector<1x1x128xf32>
    %201 = vector.shape_cast %200 : vector<1x1x128xf32> to vector<1x128xf32>
    %202 = vector.broadcast %201 : vector<1x128xf32> to vector<8x128xf32>
    %203 = arith.addf %199, %202 : vector<8x128xf32>
    %cst_147 = arith.constant 0.00999999977 : f32
    %204 = vector.broadcast %cst_147 : f32 to vector<8x128xf32>
    %205 = arith.mulf %204, %203 : vector<8x128xf32>
    %206 = arith.maximumf %203, %205 : vector<8x128xf32>
    %c5_148 = arith.constant 5 : index
    %c0_149 = arith.constant 0 : index
    %c0_150 = arith.constant 0 : index
    %207 = vector.load %arg5[%c5_148, %c0_149, %c0_150] : memref<6x128x64xf32, #tpu.memory_space<vmem>>, vector<1x128x64xf32>
    %208 = vector.shape_cast %207 : vector<1x128x64xf32> to vector<128x64xf32>
    %cst_151 = arith.constant dense<0.000000e+00> : vector<8x64xf32>
    %209 = tpu.matmul %206, %208, %cst_151 {dimension_numbers = #tpu.dot_dimension_numbers<[1], [0], [0], [1], [0, 0, 1, 1], [], []>} : vector<8x128xf32>, vector<128x64xf32>, vector<8x64xf32> -> vector<8x64xf32>
    %c5_152 = arith.constant 5 : index
    %c1_153 = arith.constant 1 : index
    %c0_154 = arith.constant 0 : index
    %210 = vector.load %arg7[%c5_152, %c1_153, %c0_154] : memref<6x3x128xf32, #tpu.memory_space<vmem>>, vector<1x1x64xf32>
    %211 = vector.shape_cast %210 : vector<1x1x64xf32> to vector<1x64xf32>
    %212 = vector.broadcast %211 : vector<1x64xf32> to vector<8x64xf32>
    %213 = arith.addf %209, %212 : vector<8x64xf32>
    %cst_155 = arith.constant 0.00999999977 : f32
    %214 = vector.broadcast %cst_155 : f32 to vector<8x64xf32>
    %215 = arith.mulf %214, %213 : vector<8x64xf32>
    %216 = arith.maximumf %213, %215 : vector<8x64xf32>
    %c5_156 = arith.constant 5 : index
    %c0_157 = arith.constant 0 : index
    %c0_158 = arith.constant 0 : index
    %217 = vector.load %arg6[%c5_156, %c0_157, %c0_158] : memref<6x64x128xf32, #tpu.memory_space<vmem>>, vector<1x64x128xf32>
    %218 = vector.shape_cast %217 : vector<1x64x128xf32> to vector<64x128xf32>
    %cst_159 = arith.constant dense<0.000000e+00> : vector<8x128xf32>
    %219 = tpu.matmul %216, %218, %cst_159 {dimension_numbers = #tpu.dot_dimension_numbers<[1], [0], [0], [1], [0, 0, 1, 1], [], []>} : vector<8x64xf32>, vector<64x128xf32>, vector<8x128xf32> -> vector<8x128xf32>
    %c5_160 = arith.constant 5 : index
    %c2_161 = arith.constant 2 : index
    %c0_162 = arith.constant 0 : index
    %220 = vector.load %arg7[%c5_160, %c2_161, %c0_162] : memref<6x3x128xf32, #tpu.memory_space<vmem>>, vector<1x1x128xf32>
    %221 = vector.shape_cast %220 : vector<1x1x128xf32> to vector<1x128xf32>
    %222 = vector.broadcast %221 : vector<1x128xf32> to vector<8x128xf32>
    %223 = arith.addf %219, %222 : vector<8x128xf32>
    %cst_163 = arith.constant 2.000000e+01 : f32
    %224 = vector.broadcast %cst_163 : f32 to vector<8x128xf32>
    %225 = arith.cmpf ogt, %223, %224 : vector<8x128xf32>
    %cst_164 = arith.constant 2.000000e+01 : f32
    %226 = vector.broadcast %cst_164 : f32 to vector<8x128xf32>
    %227 = arith.minimumf %223, %226 : vector<8x128xf32>
    %228 = math.exp %227 : vector<8x128xf32>
    %cst_165 = arith.constant 1.000000e+00 : f32
    %229 = vector.broadcast %cst_165 : f32 to vector<8x128xf32>
    %230 = arith.addf %229, %228 : vector<8x128xf32>
    %231 = math.log %230 : vector<8x128xf32>
    %232 = arith.select %225, %223, %231 : vector<8x128xi1>, vector<8x128xf32>
    %233 = tpu.iota {dimensions = array<i32: 1>} : vector<1x128xi32>
    %c4_i32_166 = arith.constant 4 : i32
    %234 = vector.broadcast %c4_i32_166 : i32 to vector<1x128xi32>
    %235 = arith.cmpi slt, %233, %234 : vector<1x128xi32>
    %cst_167 = arith.constant 0.000000e+00 : f32
    %236 = vector.shape_cast %235 : vector<1x128xi1> to vector<1x128xi1>
    %237 = vector.broadcast %236 : vector<1x128xi1> to vector<8x128xi1>
    %238 = vector.broadcast %cst_167 : f32 to vector<8x128xf32>
    %239 = arith.select %237, %232, %238 : vector<8x128xi1>, vector<8x128xf32>
    %c5_168 = arith.constant 5 : index
    %c0_169 = arith.constant 0 : index
    %c0_170 = arith.constant 0 : index
    %240 = vector.load %arg8[%c5_168, %c0_169, %c0_170] : memref<6x8x128xf32, #tpu.memory_space<vmem>>, vector<1x8x128xf32>
    %241 = vector.shape_cast %240 : vector<1x8x128xf32> to vector<8x128xf32>
    %242 = vector.shape_cast %239 : vector<8x128xf32> to vector<1x8x128xf32>
    tpu.vector_store %arg8[%c5_168, %c0_169, %c0_170], %242 {strides = array<i32>} : memref<6x8x128xf32, #tpu.memory_space<vmem>>, vector<1x8x128xf32>,
    return
  }
  func.func @transform_0(%arg0: i32) -> (i32, i32) {
    %c0_i32 = arith.constant 0 : i32
    %c0_i32_0 = arith.constant 0 : i32
    return %arg0, %c0_i32 : i32, i32
  }
  func.func @transform_1(%arg0: i32) -> (i32, i32) {
    %c0_i32 = arith.constant 0 : i32
    %c0_i32_0 = arith.constant 0 : i32
    %c0_i32_1 = arith.constant 0 : i32
    return %c0_i32, %c0_i32_0 : i32, i32
  }
  func.func @transform_2(%arg0: i32) -> (i32, i32) {
    %c0_i32 = arith.constant 0 : i32
    %c0_i32_0 = arith.constant 0 : i32
    %c0_i32_1 = arith.constant 0 : i32
    return %c0_i32, %c0_i32_0 : i32, i32
  }
  func.func @transform_3(%arg0: i32) -> (i32, i32, i32) {
    %c0_i32 = arith.constant 0 : i32
    %c0_i32_0 = arith.constant 0 : i32
    %c0_i32_1 = arith.constant 0 : i32
    %c0_i32_2 = arith.constant 0 : i32
    return %c0_i32, %c0_i32_0, %c0_i32_1 : i32, i32, i32
  }
  func.func @transform_4(%arg0: i32) -> (i32, i32, i32) {
    %c0_i32 = arith.constant 0 : i32
    %c0_i32_0 = arith.constant 0 : i32
    %c0_i32_1 = arith.constant 0 : i32
    %c0_i32_2 = arith.constant 0 : i32
    return %c0_i32, %c0_i32_0, %c0_i32_1 : i32, i32, i32
  }
  func.func @transform_5(%arg0: i32) -> (i32, i32, i32) {
    %c0_i32 = arith.constant 0 : i32
    %c0_i32_0 = arith.constant 0 : i32
    %c0_i32_1 = arith.constant 0 : i32
    %c0_i32_2 = arith.constant 0 : i32
    return %c0_i32, %c0_i32_0, %c0_i32_1 : i32, i32, i32
  }
  func.func @transform_6(%arg0: i32) -> (i32, i32, i32) {
    %c0_i32 = arith.constant 0 : i32
    %c0_i32_0 = arith.constant 0 : i32
    %c0_i32_1 = arith.constant 0 : i32
    %c0_i32_2 = arith.constant 0 : i32
    return %c0_i32, %c0_i32_0, %c0_i32_1 : i32, i32, i32
  }
  func.func @transform_7(%arg0: i32) -> (i32, i32, i32) {
    %c0_i32 = arith.constant 0 : i32
    %c0_i32_0 = arith.constant 0 : i32
    %c0_i32_1 = arith.constant 0 : i32
    return %c0_i32, %arg0, %c0_i32_0 : i32, i32, i32
  }
}

</mosaic_0001>

<llo_original>
// kernel: actor_forward.1
$region0: #{actor_forward.1}
  #allocation0 [shape = 'u32[]', space=smem, size = 0x4, offset = 0x4, fixed_abs, tag = 'smem constant byte address 0x4 - core index']
  #allocation1 [shape = 'u32[72,128]{1,0:T(1,128)}', space=vmem, size = 0x9000, scoped, tag = 'internal scratch']
  %s0 = inlined_call_operand.vmem [shape: f32[8,20], index: 0, kind: input, shape index: {}]
  %s1 = inlined_call_operand.vmem [shape: f32[20,1536], index: 1, kind: input, shape index: {}]
  %s2 = inlined_call_operand.vmem [shape: f32[1,1536], index: 2, kind: input, shape index: {}]
  %s3 = inlined_call_operand.hbm [shape: f32[6,256,128], index: 3, kind: input, shape index: {}]
  %s4 = inlined_call_operand.vmem [shape: f32[6,128,64], index: 4, kind: input, shape index: {}]
  %s5 = inlined_call_operand.vmem [shape: f32[6,64,128], index: 5, kind: input, shape index: {}]
  %s6 = inlined_call_operand.vmem [shape: f32[6,3,128], index: 6, kind: input, shape index: {}]
  %s7 = inlined_call_operand.vmem [shape: f32[6,8,128], index: 7, kind: output, shape index: {}]
  %s8 = sld [smem:[#allocation0]]
  $region42: #{actor_forward.1} parent=0
    _
  %s10 = ssub.s32 1, %s8
  %s11 = scalar_select 0, %s10, %s8
  $region1: #{actor_forward.1} parent=0
    #allocation2 [shape = 'u8[786432]{0}', space=vmem, size = 0xc0000, scoped, tag = 'input window, operand 3, single buffered']
    #allocation3 [shape = 's32[1]{0}', space=sflag, size = 0x4, scoped, tag = 'scoped memory for actor_forward.1']
    %12 = vsyncpa [#allocation3], 0
    // Predicated region
    $region2: #{actor_forward.1} parent=1 // pred_check
      _
    $region3: #{actor_forward.1} parent=1 // pred_check_branch
      %14 = sbr.rel (0) target = $region5
    $region4: #{actor_forward.1} parent=1 // pred_region
      _
    $region5: #{actor_forward.1} parent=1 // pred_fallthru
      _
    // Predicated region
    $region6: #{actor_forward.1} parent=1 // pred_check
      _
    $region7: #{actor_forward.1} parent=1 // pred_check_branch
      %16 = sbr.rel (0) target = $region9
    $region8: #{actor_forward.1} parent=1 // pred_region
      _
    $region9: #{actor_forward.1} parent=1 // pred_fallthru
      _
    // Predicated region
    $region10: #{actor_forward.1} parent=1 // pred_check
      _
    $region11: #{actor_forward.1} parent=1 // pred_check_branch
      %18 = sbr.rel (0) target = $region13
    $region12: #{actor_forward.1} parent=1 // pred_region
      _
    $region13: #{actor_forward.1} parent=1 // pred_fallthru
      _
    // Predicated region
    $region14: #{actor_forward.1} parent=1 // pred_check
      _
    $region15: #{actor_forward.1} parent=1 // pred_check_branch
      %20 = sbr.rel (0) target = $region17
    $region16: #{actor_forward.1} parent=1 // pred_region
      %22 = vsyncadd [#allocation3], 0
      %s23 = sshll.u32 %s3, 4
      %s24 = int_to_ptr.hbm [resolvable:$true] %s23
      %s25 = sshll.u32 [#allocation2], 4
      %s26 = int_to_ptr.vmem [resolvable:$true] %s25
      %31 = dma.hbm_to_vmem [thread:$0]  %s24, 24576, %s26, [#allocation3], 128, 128, 8
    $region17: #{actor_forward.1} parent=1 // pred_fallthru
      _
    // Predicated region
    $region18: #{actor_forward.1} parent=1 // pred_check
      _
    $region19: #{actor_forward.1} parent=1 // pred_check_branch
      %33 = sbr.rel (0) target = $region21
    $region20: #{actor_forward.1} parent=1 // pred_region
      _
    $region21: #{actor_forward.1} parent=1 // pred_fallthru
      _
    // Predicated region
    $region22: #{actor_forward.1} parent=1 // pred_check
      _
    $region23: #{actor_forward.1} parent=1 // pred_check_branch
      %35 = sbr.rel (0) target = $region25
    $region24: #{actor_forward.1} parent=1 // pred_region
      _
    $region25: #{actor_forward.1} parent=1 // pred_fallthru
      _
    // Predicated region
    $region26: #{actor_forward.1} parent=1 // pred_check
      _
    $region27: #{actor_forward.1} parent=1 // pred_check_branch
      %37 = sbr.rel (0) target = $region29
    $region28: #{actor_forward.1} parent=1 // pred_region
      _
    $region29: #{actor_forward.1} parent=1 // pred_fallthru
      _
    // Predicated region
    $region30: #{actor_forward.1} parent=1 // pred_check
      _
    $region31: #{actor_forward.1} parent=1 // pred_check_branch
      %39 = sbr.rel (0) target = $region33
    $region32: #{actor_forward.1} parent=1 // pred_region
      %41 = dma.done [#allocation3], 24576
    $region33: #{actor_forward.1} parent=1 // pred_fallthru
      _
    %v42 = vld [vmem:[%s0] sm:$0xff]
    %v43 = vld [vmem:[%s1] sm:$0xff]
    %v44 = vld [vmem:[%s1 + $0x8] sm:$0xff]
    %v45 = vld [vmem:[%s1 + $0x10] sm:$0xff]
    %v46 = vld [vmem:[%s1 + $0x18] sm:$0xff]
    %v47 = vld [vmem:[%s1 + $0x20] sm:$0xff]
    %v48 = vld [vmem:[%s1 + $0x28] sm:$0xff]
    %v49 = vld [vmem:[%s1 + $0x30] sm:$0xff]
    %v50 = vld [vmem:[%s1 + $0x38] sm:$0xff]
    %v51 = vld [vmem:[%s1 + $0x40] sm:$0xff]
    %v52 = vld [vmem:[%s1 + $0x48] sm:$0xff]
    %v53 = vld [vmem:[%s1 + $0x50] sm:$0xff]
    %v54 = vld [vmem:[%s1 + $0x58] sm:$0xff]
    %v55 = vld [vmem:[%s1 + $0x60] sm:$0xff]
    %v56 = vld [vmem:[%s1 + $0x68] sm:$0xff]
    %v57 = vld [vmem:[%s1 + $0x70] sm:$0xff]
    %v58 = vld [vmem:[%s1 + $0x78] sm:$0xff]
    %v59 = vld [vmem:[%s1 + $0x80] sm:$0xff]
    %v60 = vld [vmem:[%s1 + $0x88] sm:$0xff]
    %v61 = vld [vmem:[%s1 + $0x90] sm:$0xff]
    %v62 = vld [vmem:[%s1 + $0x98] sm:$0xff]
    %v63 = vld [vmem:[%s1 + $0xa0] sm:$0xff]
    %v64 = vld [vmem:[%s1 + $0xa8] sm:$0xff]
    %v65 = vld [vmem:[%s1 + $0xb0] sm:$0xff]
    %v66 = vld [vmem:[%s1 + $0xb8] sm:$0xff]
    %v67 = vld [vmem:[%s1 + $0xc0] sm:$0xf]
    %v68 = vld [vmem:[%s1 + $0xc8] sm:$0xf]
    %v69 = vld [vmem:[%s1 + $0xd0] sm:$0xf]
    %v70 = vld [vmem:[%s1 + $0xd8] sm:$0xf]
    %v71 = vld [vmem:[%s1 + $0xe0] sm:$0xf]
    %v72 = vld [vmem:[%s1 + $0xe8] sm:$0xf]
    %v73 = vld [vmem:[%s1 + $0xf0] sm:$0xf]
    %v74 = vld [vmem:[%s1 + $0xf8] sm:$0xf]
    %v75 = vld [vmem:[%s1 + $0x100] sm:$0xf]
    %v76 = vld [vmem:[%s1 + $0x108] sm:$0xf]
    %v77 = vld [vmem:[%s1 + $0x110] sm:$0xf]
    %v78 = vld [vmem:[%s1 + $0x118] sm:$0xf]
    %v79 = vld [vmem:[%s2] sm:$0xff]
    %v80 = vld [vmem:[%s2 + $0x8] sm:$0xf]
    %v83 = vperm.slane %v79, 0
    %v84 = vperm.slane %v79, 1
    %v85 = vperm.slane %v79, 2
    %v86 = vperm.slane %v79, 3
    %v87 = vperm.slane %v79, 4
    %v88 = vperm.slane %v79, 5
    %v89 = vperm.slane %v79, 6
    %v90 = vperm.slane %v79, 7
    %v91 = vperm.slane %v80, 0
    %v92 = vperm.slane %v80, 1
    %v93 = vperm.slane %v80, 2
    %v94 = vperm.slane %v80, 3
    %vm107 = vcmask 162816
    %v109 = vsel %vm107, %v42, 0
    %vm111 = vcmask 1043456
    %v113 = vsel %vm111, %v67, 0
    %v116 = vsel %vm111, %v68, 0
    %v119 = vsel %vm111, %v69, 0
    %v122 = vsel %vm111, %v70, 0
    %v125 = vsel %vm111, %v71, 0
    %v128 = vsel %vm111, %v72, 0
    %v131 = vsel %vm111, %v73, 0
    %v134 = vsel %vm111, %v74, 0
    %v137 = vsel %vm111, %v75, 0
    %v140 = vsel %vm111, %v76, 0
    %v143 = vsel %vm111, %v77, 0
    %v146 = vsel %vm111, %v78, 0
    %148 = vmatpush.msra.mxu0 0.0
    %149 = vmatpush.msra.mxu0 0.0
    %150 = vmatpush.msra.mxu0 0.0
    %151 = vmatpush.msra.mxu0 0.0
    %152 = vmatpush.msra.mxu0 0.0
    %153 = vmatpush.msra.mxu0 0.0
    %154 = vmatpush.msra.mxu0 0.0
    %155 = vmatpush.msra.mxu0 0.0
    %156 = vmatpush.msra.mxu0 0.0
    %157 = vmatpush.msra.mxu0 0.0
    %158 = vmatpush.msra.mxu0 0.0
    %159 = vmatpush.msra.mxu0 0.0
    %160 = vmatpush.msra.mxu0 0.0
    %161 = vmatpush.msra.mxu0 %v113
    %162 = vmatpush.msra.mxu0 %v55
    %163 = vmatpush.msra.mxu0 %v43
    %164 = vmatmul.f32.gmra.mxu0 %v109
    %v165 = vpop.f32.mrf.mxu0
    %v166 = vadd.f32 %v83, %v165
    %167 = vdwg.mxu0
    %168 = vmatpush.msra.mxu0 0.0
    %169 = vmatpush.msra.mxu0 0.0
    %170 = vmatpush.msra.mxu0 0.0
    %171 = vmatpush.msra.mxu0 0.0
    %172 = vmatpush.msra.mxu0 0.0
    %173 = vmatpush.msra.mxu0 0.0
    %174 = vmatpush.msra.mxu0 0.0
    %175 = vmatpush.msra.mxu0 0.0
    %176 = vmatpush.msra.mxu0 0.0
    %177 = vmatpush.msra.mxu0 0.0
    %178 = vmatpush.msra.mxu0 0.0
    %179 = vmatpush.msra.mxu0 0.0
    %180 = vmatpush.msra.mxu0 0.0
    %181 = vmatpush.msra.mxu0 %v116
    %182 = vmatpush.msra.mxu0 %v56
    %183 = vmatpush.msra.mxu0 %v44
    %184 = vmatmul.f32.gmra.mxu0 %v109
    %v185 = vpop.f32.mrf.mxu0
    %v186 = vadd.f32 %v84, %v185
    %187 = vdwg.mxu0
    %188 = vmatpush.msra.mxu0 0.0
    %189 = vmatpush.msra.mxu0 0.0
    %190 = vmatpush.msra.mxu0 0.0
    %191 = vmatpush.msra.mxu0 0.0
    %192 = vmatpush.msra.mxu0 0.0
    %193 = vmatpush.msra.mxu0 0.0
    %194 = vmatpush.msra.mxu0 0.0
    %195 = vmatpush.msra.mxu0 0.0
    %196 = vmatpush.msra.mxu0 0.0
    %197 = vmatpush.msra.mxu0 0.0
    %198 = vmatpush.msra.mxu0 0.0
    %199 = vmatpush.msra.mxu0 0.0
    %200 = vmatpush.msra.mxu0 0.0
    %201 = vmatpush.msra.mxu0 %v119
    %202 = vmatpush.msra.mxu0 %v57
    %203 = vmatpush.msra.mxu0 %v45
    %204 = vmatmul.f32.gmra.mxu0 %v109
    %v205 = vpop.f32.mrf.mxu0
    %v206 = vadd.f32 %v85, %v205
    %207 = vdwg.mxu0
    %208 = vmatpush.msra.mxu0 0.0
    %209 = vmatpush.msra.mxu0 0.0
    %210 = vmatpush.msra.mxu0 0.0
    %211 = vmatpush.msra.mxu0 0.0
    %212 = vmatpush.msra.mxu0 0.0
    %213 = vmatpush.msra.mxu0 0.0
    %214 = vmatpush.msra.mxu0 0.0
    %215 = vmatpush.msra.mxu0 0.0
    %216 = vmatpush.msra.mxu0 0.0
    %217 = vmatpush.msra.mxu0 0.0
    %218 = vmatpush.msra.mxu0 0.0
    %219 = vmatpush.msra.mxu0 0.0
    %220 = vmatpush.msra.mxu0 0.0
    %221 = vmatpush.msra.mxu0 %v122
    %222 = vmatpush.msra.mxu0 %v58
    %223 = vmatpush.msra.mxu0 %v46
    %224 = vmatmul.f32.gmra.mxu0 %v109
    %v225 = vpop.f32.mrf.mxu0
    %v226 = vadd.f32 %v86, %v225
    %227 = vdwg.mxu0
    %228 = vmatpush.msra.mxu0 0.0
    %229 = vmatpush.msra.mxu0 0.0
    %230 = vmatpush.msra.mxu0 0.0
    %231 = vmatpush.msra.mxu0 0.0
    %232 = vmatpush.msra.mxu0 0.0
    %233 = vmatpush.msra.mxu0 0.0
    %234 = vmatpush.msra.mxu0 0.0
    %235 = vmatpush.msra.mxu0 0.0
    %236 = vmatpush.msra.mxu0 0.0
    %237 = vmatpush.msra.mxu0 0.0
    %238 = vmatpush.msra.mxu0 0.0
    %239 = vmatpush.msra.mxu0 0.0
    %240 = vmatpush.msra.mxu0 0.0
    %241 = vmatpush.msra.mxu0 %v125
    %242 = vmatpush.msra.mxu0 %v59
    %243 = vmatpush.msra.mxu0 %v47
    %244 = vmatmul.f32.gmra.mxu0 %v109
    %v245 = vpop.f32.mrf.mxu0
    %v246 = vadd.f32 %v87, %v245
    %247 = vdwg.mxu0
    %248 = vmatpush.msra.mxu0 0.0
    %249 = vmatpush.msra.mxu0 0.0
    %250 = vmatpush.msra.mxu0 0.0
    %251 = vmatpush.msra.mxu0 0.0
    %252 = vmatpush.msra.mxu0 0.0
    %253 = vmatpush.msra.mxu0 0.0
    %254 = vmatpush.msra.mxu0 0.0
    %255 = vmatpush.msra.mxu0 0.0
    %256 = vmatpush.msra.mxu0 0.0
    %257 = vmatpush.msra.mxu0 0.0
    %258 = vmatpush.msra.mxu0 0.0
    %259 = vmatpush.msra.mxu0 0.0
    %260 = vmatpush.msra.mxu0 0.0
    %261 = vmatpush.msra.mxu0 %v128
    %262 = vmatpush.msra.mxu0 %v60
    %263 = vmatpush.msra.mxu0 %v48
    %264 = vmatmul.f32.gmra.mxu0 %v109
    %v265 = vpop.f32.mrf.mxu0
    %v266 = vadd.f32 %v88, %v265
    %267 = vdwg.mxu0
    %268 = vmatpush.msra.mxu0 0.0
    %269 = vmatpush.msra.mxu0 0.0
    %270 = vmatpush.msra.mxu0 0.0
    %271 = vmatpush.msra.mxu0 0.0
    %272 = vmatpush.msra.mxu0 0.0
    %273 = vmatpush.msra.mxu0 0.0
    %274 = vmatpush.msra.mxu0 0.0
    %275 = vmatpush.msra.mxu0 0.0
    %276 = vmatpush.msra.mxu0 0.0
    %277 = vmatpush.msra.mxu0 0.0
    %278 = vmatpush.msra.mxu0 0.0
    %279 = vmatpush.msra.mxu0 0.0
    %280 = vmatpush.msra.mxu0 0.0
    %281 = vmatpush.msra.mxu0 %v131
    %282 = vmatpush.msra.mxu0 %v61
    %283 = vmatpush.msra.mxu0 %v49
    %284 = vmatmul.f32.gmra.mxu0 %v109
    %v285 = vpop.f32.mrf.mxu0
    %v286 = vadd.f32 %v89, %v285
    %287 = vdwg.mxu0
    %288 = vmatpush.msra.mxu0 0.0
    %289 = vmatpush.msra.mxu0 0.0
    %290 = vmatpush.msra.mxu0 0.0
    %291 = vmatpush.msra.mxu0 0.0
    %292 = vmatpush.msra.mxu0 0.0
    %293 = vmatpush.msra.mxu0 0.0
    %294 = vmatpush.msra.mxu0 0.0
    %295 = vmatpush.msra.mxu0 0.0
    %296 = vmatpush.msra.mxu0 0.0
    %297 = vmatpush.msra.mxu0 0.0
    %298 = vmatpush.msra.mxu0 0.0
    %299 = vmatpush.msra.mxu0 0.0
    %300 = vmatpush.msra.mxu0 0.0
    %301 = vmatpush.msra.mxu0 %v134
    %302 = vmatpush.msra.mxu0 %v62
    %303 = vmatpush.msra.mxu0 %v50
    %304 = vmatmul.f32.gmra.mxu0 %v109
    %v305 = vpop.f32.mrf.mxu0
    %v306 = vadd.f32 %v90, %v305
    %307 = vdwg.mxu0
    %308 = vmatpush.msra.mxu0 0.0
    %309 = vmatpush.msra.mxu0 0.0
    %310 = vmatpush.msra.mxu0 0.0
    %311 = vmatpush.msra.mxu0 0.0
    %312 = vmatpush.msra.mxu0 0.0
    %313 = vmatpush.msra.mxu0 0.0
    %314 = vmatpush.msra.mxu0 0.0
    %315 = vmatpush.msra.mxu0 0.0
    %316 = vmatpush.msra.mxu0 0.0
    %317 = vmatpush.msra.mxu0 0.0
    %318 = vmatpush.msra.mxu0 0.0
    %319 = vmatpush.msra.mxu0 0.0
    %320 = vmatpush.msra.mxu0 0.0
    %321 = vmatpush.msra.mxu0 %v137
    %322 = vmatpush.msra.mxu0 %v63
    %323 = vmatpush.msra.mxu0 %v51
    %324 = vmatmul.f32.gmra.mxu0 %v109
    %v325 = vpop.f32.mrf.mxu0
    %v326 = vadd.f32 %v91, %v325
    %327 = vdwg.mxu0
    %328 = vmatpush.msra.mxu0 0.0
    %329 = vmatpush.msra.mxu0 0.0
    %330 = vmatpush.msra.mxu0 0.0
    %331 = vmatpush.msra.mxu0 0.0
    %332 = vmatpush.msra.mxu0 0.0
    %333 = vmatpush.msra.mxu0 0.0
    %334 = vmatpush.msra.mxu0 0.0
    %335 = vmatpush.msra.mxu0 0.0
    %336 = vmatpush.msra.mxu0 0.0
    %337 = vmatpush.msra.mxu0 0.0
    %338 = vmatpush.msra.mxu0 0.0
    %339 = vmatpush.msra.mxu0 0.0
    %340 = vmatpush.msra.mxu0 0.0
    %341 = vmatpush.msra.mxu0 %v140
    %342 = vmatpush.msra.mxu0 %v64
    %343 = vmatpush.msra.mxu0 %v52
    %344 = vmatmul.f32.gmra.mxu0 %v109
    %v345 = vpop.f32.mrf.mxu0
    %v346 = vadd.f32 %v92, %v345
    %347 = vdwg.mxu0
    %348 = vmatpush.msra.mxu0 0.0
    %349 = vmatpush.msra.mxu0 0.0
    %350 = vmatpush.msra.mxu0 0.0
    %351 = vmatpush.msra.mxu0 0.0
    %352 = vmatpush.msra.mxu0 0.0
    %353 = vmatpush.msra.mxu0 0.0
    %354 = vmatpush.msra.mxu0 0.0
    %355 = vmatpush.msra.mxu0 0.0
    %356 = vmatpush.msra.mxu0 0.0
    %357 = vmatpush.msra.mxu0 0.0
    %358 = vmatpush.msra.mxu0 0.0
    %359 = vmatpush.msra.mxu0 0.0
    %360 = vmatpush.msra.mxu0 0.0
    %361 = vmatpush.msra.mxu0 %v143
    %362 = vmatpush.msra.mxu0 %v65
    %363 = vmatpush.msra.mxu0 %v53
    %364 = vmatmul.f32.gmra.mxu0 %v109
    %v365 = vpop.f32.mrf.mxu0
    %v366 = vadd.f32 %v93, %v365
    %367 = vdwg.mxu0
    %368 = vmatpush.msra.mxu0 0.0
    %369 = vmatpush.msra.mxu0 0.0
    %370 = vmatpush.msra.mxu0 0.0
    %371 = vmatpush.msra.mxu0 0.0
    %372 = vmatpush.msra.mxu0 0.0
    %373 = vmatpush.msra.mxu0 0.0
    %374 = vmatpush.msra.mxu0 0.0
    %375 = vmatpush.msra.mxu0 0.0
    %376 = vmatpush.msra.mxu0 0.0
    %377 = vmatpush.msra.mxu0 0.0
    %378 = vmatpush.msra.mxu0 0.0
    %379 = vmatpush.msra.mxu0 0.0
    %380 = vmatpush.msra.mxu0 0.0
    %381 = vmatpush.msra.mxu0 %v146
    %382 = vmatpush.msra.mxu0 %v66
    %383 = vmatpush.msra.mxu0 %v54
    %384 = vmatmul.f32.gmra.mxu0 %v109
    %v385 = vpop.f32.mrf.mxu0
    %v386 = vadd.f32 %v94, %v385
    %387 = vdwg.mxu0
    %v388 = vmul.f32 %v166, 0.01
    %v389 = vmul.f32 %v186, 0.01
    %v390 = vmul.f32 %v206, 0.01
    %v391 = vmul.f32 %v226, 0.01
    %v392 = vmul.f32 %v246, 0.01
    %v393 = vmul.f32 %v266, 0.01
    %v394 = vmul.f32 %v286, 0.01
    %v395 = vmul.f32 %v306, 0.01
    %v396 = vmul.f32 %v326, 0.01
    %v397 = vmul.f32 %v346, 0.01
    %v398 = vmul.f32 %v366, 0.01
    %v399 = vmul.f32 %v386, 0.01
    %v400 = vmax.f32 %v166, %v388
    %v401 = vmax.f32 %v186, %v389
    %v402 = vmax.f32 %v206, %v390
    %v403 = vmax.f32 %v226, %v391
    %v404 = vmax.f32 %v246, %v392
    %v405 = vmax.f32 %v266, %v393
    %v406 = vmax.f32 %v286, %v394
    %v407 = vmax.f32 %v306, %v395
    %v408 = vmax.f32 %v326, %v396
    %v409 = vmax.f32 %v346, %v397
    %v410 = vmax.f32 %v366, %v398
    %v411 = vmax.f32 %v386, %v399
    %v412 = vld [vmem:[#allocation2] sm:$0xff]
    %v413 = vld [vmem:[#allocation2 + $0x8] sm:$0xff]
    %v414 = vld [vmem:[#allocation2 + $0x10] sm:$0xff]
    %v415 = vld [vmem:[#allocation2 + $0x18] sm:$0xff]
    %v416 = vld [vmem:[#allocation2 + $0x20] sm:$0xff]
    %v417 = vld [vmem:[#allocation2 + $0x28] sm:$0xff]
    %v418 = vld [vmem:[#allocation2 + $0x30] sm:$0xff]
    %v419 = vld [vmem:[#allocation2 + $0x38] sm:$0xff]
    %v420 = vld [vmem:[#allocation2 + $0x40] sm:$0xff]
    %v421 = vld [vmem:[#allocation2 + $0x48] sm:$0xff]
    %v422 = vld [vmem:[#allocation2 + $0x50] sm:$0xff]
    %v423 = vld [vmem:[#allocation2 + $0x58] sm:$0xff]
    %v424 = vld [vmem:[#allocation2 + $0x60] sm:$0xff]
    %v425 = vld [vmem:[#allocation2 + $0x68] sm:$0xff]
    %v426 = vld [vmem:[#allocation2 + $0x70] sm:$0xff]
    %v427 = vld [vmem:[#allocation2 + $0x78] sm:$0xff]
    %v428 = vld [vmem:[#allocation2 + $0x80] sm:$0xff]
    %v429 = vld [vmem:[#allocation2 + $0x88] sm:$0xff]
    %v430 = vld [vmem:[#allocation2 + $0x90] sm:$0xff]
    %v431 = vld [vmem:[#allocation2 + $0x98] sm:$0xff]
    %v432 = vld [vmem:[#allocation2 + $0xa0] sm:$0xff]
    %v433 = vld [vmem:[#allocation2 + $0xa8] sm:$0xff]
    %v434 = vld [vmem:[#allocation2 + $0xb0] sm:$0xff]
    %v435 = vld [vmem:[#allocation2 + $0xb8] sm:$0xff]
    %v436 = vld [vmem:[#allocation2 + $0xc0] sm:$0xff]
    %v437 = vld [vmem:[#allocation2 + $0xc8] sm:$0xff]
    %v438 = vld [vmem:[#allocation2 + $0xd0] sm:$0xff]
    %v439 = vld [vmem:[#allocation2 + $0xd8] sm:$0xff]
    %v440 = vld [vmem:[#allocation2 + $0xe0] sm:$0xff]
    %v441 = vld [vmem:[#allocation2 + $0xe8] sm:$0xff]
    %v442 = vld [vmem:[#allocation2 + $0xf0] sm:$0xff]
    %v443 = vld [vmem:[#allocation2 + $0xf8] sm:$0xff]
    %v444 = vld [vmem:[%s6] sm:$0x1]
    %v445 = vperm.slane %v444, 0
    %446 = vmatpush.msra.mxu0 %v427
    %447 = vmatpush.msra.mxu0 %v426
    %448 = vmatpush.msra.mxu0 %v425
    %449 = vmatpush.msra.mxu0 %v424
    %450 = vmatpush.msra.mxu0 %v423
    %451 = vmatpush.msra.mxu0 %v422
    %452 = vmatpush.msra.mxu0 %v421
    %453 = vmatpush.msra.mxu0 %v420
    %454 = vmatpush.msra.mxu0 %v419
    %455 = vmatpush.msra.mxu0 %v418
    %456 = vmatpush.msra.mxu0 %v417
    %457 = vmatpush.msra.mxu0 %v416
    %458 = vmatpush.msra.mxu0 %v415
    %459 = vmatpush.msra.mxu0 %v414
    %460 = vmatpush.msra.mxu0 %v413
    %461 = vmatpush.msra.mxu0 %v412
    %462 = vmatmul.f32.gmra.mxu0 %v400
    %v463 = vpop.f32.mrf.mxu0
    %v464 = vadd.f32 %v445, %v463
    %465 = vdwg.mxu0
    %466 = vmatpush.msra.mxu0 %v443
    %467 = vmatpush.msra.mxu0 %v442
    %468 = vmatpush.msra.mxu0 %v441
    %469 = vmatpush.msra.mxu0 %v440
    %470 = vmatpush.msra.mxu0 %v439
    %471 = vmatpush.msra.mxu0 %v438
    %472 = vmatpush.msra.mxu0 %v437
    %473 = vmatpush.msra.mxu0 %v436
    %474 = vmatpush.msra.mxu0 %v435
    %475 = vmatpush.msra.mxu0 %v434
    %476 = vmatpush.msra.mxu0 %v433
    %477 = vmatpush.msra.mxu0 %v432
    %478 = vmatpush.msra.mxu0 %v431
    %479 = vmatpush.msra.mxu0 %v430
    %480 = vmatpush.msra.mxu0 %v429
    %481 = vmatpush.msra.mxu0 %v428
    %482 = vmatmul.f32.gmra.mxu0 %v401
    %v483 = vpop.f32.mrf.mxu0
    %v484 = vadd.f32 %v464, %v483
    %485 = vdwg.mxu0
    %v486 = vmul.f32 %v484, 0.01
    %v487 = vmax.f32 %v484, %v486
    %v488 = vld [vmem:[%s4] sm:$0xff]
    %v489 = vld [vmem:[%s4 + $0x8] sm:$0xff]
    %v490 = vld [vmem:[%s4 + $0x10] sm:$0xff]
    %v491 = vld [vmem:[%s4 + $0x18] sm:$0xff]
    %v492 = vld [vmem:[%s4 + $0x20] sm:$0xff]
    %v493 = vld [vmem:[%s4 + $0x28] sm:$0xff]
    %v494 = vld [vmem:[%s4 + $0x30] sm:$0xff]
    %v495 = vld [vmem:[%s4 + $0x38] sm:$0xff]
    %v496 = vld [vmem:[%s4 + $0x40] sm:$0xff]
    %v497 = vld [vmem:[%s4 + $0x48] sm:$0xff]
    %v498 = vld [vmem:[%s4 + $0x50] sm:$0xff]
    %v499 = vld [vmem:[%s4 + $0x58] sm:$0xff]
    %v500 = vld [vmem:[%s4 + $0x60] sm:$0xff]
    %v501 = vld [vmem:[%s4 + $0x68] sm:$0xff]
    %v502 = vld [vmem:[%s4 + $0x70] sm:$0xff]
    %v503 = vld [vmem:[%s4 + $0x78] sm:$0xff]
    %v504 = vld [vmem:[%s6 + $0x1] sm:$0x1]
    %v505 = vperm.slane %v504, 0
    %506 = vmatpush.msra.mxu0 %v503
    %507 = vmatpush.msra.mxu0 %v502
    %508 = vmatpush.msra.mxu0 %v501
    %509 = vmatpush.msra.mxu0 %v500
    %510 = vmatpush.msra.mxu0 %v499
    %511 = vmatpush.msra.mxu0 %v498
    %512 = vmatpush.msra.mxu0 %v497
    %513 = vmatpush.msra.mxu0 %v496
    %514 = vmatpush.msra.mxu0 %v495
    %515 = vmatpush.msra.mxu0 %v494
    %516 = vmatpush.msra.mxu0 %v493
    %517 = vmatpush.msra.mxu0 %v492
    %518 = vmatpush.msra.mxu0 %v491
    %519 = vmatpush.msra.mxu0 %v490
    %520 = vmatpush.msra.mxu0 %v489
    %521 = vmatpush.msra.mxu0 %v488
    %522 = vmatmul.f32.gmra.mxu0 %v487
    %v523 = vpop.f32.mrf.mxu0
    %v524 = vadd.f32 %v505, %v523
    %525 = vdwg.mxu0
    %v526 = vmul.f32 %v524, 0.01
    %v527 = vmax.f32 %v524, %v526
    %v528 = vld [vmem:[%s5] sm:$0xff]
    %v529 = vld [vmem:[%s5 + $0x8] sm:$0xff]
    %v530 = vld [vmem:[%s5 + $0x10] sm:$0xff]
    %v531 = vld [vmem:[%s5 + $0x18] sm:$0xff]
    %v532 = vld [vmem:[%s5 + $0x20] sm:$0xff]
    %v533 = vld [vmem:[%s5 + $0x28] sm:$0xff]
    %v534 = vld [vmem:[%s5 + $0x30] sm:$0xff]
    %v535 = vld [vmem:[%s5 + $0x38] sm:$0xff]
    %v536 = vld [vmem:[%s6 + $0x2] sm:$0x1]
    %v537 = vperm.slane %v536, 0
    %vm538 = vcmask 523264
    %v540 = vsel %vm538, %v527, 0
    %542 = vmatpush.msra.mxu0 0.0
    %543 = vmatpush.msra.mxu0 0.0
    %544 = vmatpush.msra.mxu0 0.0
    %545 = vmatpush.msra.mxu0 0.0
    %546 = vmatpush.msra.mxu0 0.0
    %547 = vmatpush.msra.mxu0 0.0
    %548 = vmatpush.msra.mxu0 0.0
    %549 = vmatpush.msra.mxu0 0.0
    %550 = vmatpush.msra.mxu0 %v535
    %551 = vmatpush.msra.mxu0 %v534
    %552 = vmatpush.msra.mxu0 %v533
    %553 = vmatpush.msra.mxu0 %v532
    %554 = vmatpush.msra.mxu0 %v531
    %555 = vmatpush.msra.mxu0 %v530
    %556 = vmatpush.msra.mxu0 %v529
    %557 = vmatpush.msra.mxu0 %v528
    %558 = vmatmul.f32.gmra.mxu0 %v540
    %v559 = vpop.f32.mrf.mxu0
    %v560 = vadd.f32 %v537, %v559
    %561 = vdwg.mxu0
    %562 = vst [vmem:[%s7] sm:$0xff] %v560
    %s563 = scalar_lea.vmem [#allocation2], 256
    %v564 = vld [vmem:[%s563] sm:$0xff]
    %v565 = vld [vmem:[%s563 + $0x8] sm:$0xff]
    %v566 = vld [vmem:[%s563 + $0x10] sm:$0xff]
    %v567 = vld [vmem:[%s563 + $0x18] sm:$0xff]
    %v568 = vld [vmem:[%s563 + $0x20] sm:$0xff]
    %v569 = vld [vmem:[%s563 + $0x28] sm:$0xff]
    %v570 = vld [vmem:[%s563 + $0x30] sm:$0xff]
    %v571 = vld [vmem:[%s563 + $0x38] sm:$0xff]
    %v572 = vld [vmem:[%s563 + $0x40] sm:$0xff]
    %v573 = vld [vmem:[%s563 + $0x48] sm:$0xff]
    %v574 = vld [vmem:[%s563 + $0x50] sm:$0xff]
    %v575 = vld [vmem:[%s563 + $0x58] sm:$0xff]
    %v576 = vld [vmem:[%s563 + $0x60] sm:$0xff]
    %v577 = vld [vmem:[%s563 + $0x68] sm:$0xff]
    %v578 = vld [vmem:[%s563 + $0x70] sm:$0xff]
    %v579 = vld [vmem:[%s563 + $0x78] sm:$0xff]
    %v580 = vld [vmem:[%s563 + $0x80] sm:$0xff]
    %v581 = vld [vmem:[%s563 + $0x88] sm:$0xff]
    %v582 = vld [vmem:[%s563 + $0x90] sm:$0xff]
    %v583 = vld [vmem:[%s563 + $0x98] sm:$0xff]
    %v584 = vld [vmem:[%s563 + $0xa0] sm:$0xff]
    %v585 = vld [vmem:[%s563 + $0xa8] sm:$0xff]
    %v586 = vld [vmem:[%s563 + $0xb0] sm:$0xff]
    %v587 = vld [vmem:[%s563 + $0xb8] sm:$0xff]
    %v588 = vld [vmem:[%s563 + $0xc0] sm:$0xff]
    %v589 = vld [vmem:[%s563 + $0xc8] sm:$0xff]
    %v590 = vld [vmem:[%s563 + $0xd0] sm:$0xff]
    %v591 = vld [vmem:[%s563 + $0xd8] sm:$0xff]
    %v592 = vld [vmem:[%s563 + $0xe0] sm:$0xff]
    %v593 = vld [vmem:[%s563 + $0xe8] sm:$0xff]
    %v594 = vld [vmem:[%s563 + $0xf0] sm:$0xff]
    %v595 = vld [vmem:[%s563 + $0xf8] sm:$0xff]
    %s596 = scalar_lea.vmem %s6, 4
    %v597 = vld [vmem:[%s596] sm:$0x1]
    %v598 = vperm.slane %v597, 0
    %599 = vmatpush.msra.mxu0 %v579
    %600 = vmatpush.msra.mxu0 %v578
    %601 = vmatpush.msra.mxu0 %v577
    %602 = vmatpush.msra.mxu0 %v576
    %603 = vmatpush.msra.mxu0 %v575
    %604 = vmatpush.msra.mxu0 %v574
    %605 = vmatpush.msra.mxu0 %v573
    %606 = vmatpush.msra.mxu0 %v572
    %607 = vmatpush.msra.mxu0 %v571
    %608 = vmatpush.msra.mxu0 %v570
    %609 = vmatpush.msra.mxu0 %v569
    %610 = vmatpush.msra.mxu0 %v568
    %611 = vmatpush.msra.mxu0 %v567
    %612 = vmatpush.msra.mxu0 %v566
    %613 = vmatpush.msra.mxu0 %v565
    %614 = vmatpush.msra.mxu0 %v564
    %615 = vmatmul.f32.gmra.mxu0 %v402
    %v616 = vpop.f32.mrf.mxu0
    %v617 = vadd.f32 %v598, %v616
    %618 = vdwg.mxu0
    %619 = vmatpush.msra.mxu0 %v595
    %620 = vmatpush.msra.mxu0 %v594
    %621 = vmatpush.msra.mxu0 %v593
    %622 = vmatpush.msra.mxu0 %v592
    %623 = vmatpush.msra.mxu0 %v591
    %624 = vmatpush.msra.mxu0 %v590
    %625 = vmatpush.msra.mxu0 %v589
    %626 = vmatpush.msra.mxu0 %v588
    %627 = vmatpush.msra.mxu0 %v587
    %628 = vmatpush.msra.mxu0 %v586
    %629 = vmatpush.msra.mxu0 %v585
    %630 = vmatpush.msra.mxu0 %v584
    %631 = vmatpush.msra.mxu0 %v583
    %632 = vmatpush.msra.mxu0 %v582
    %633 = vmatpush.msra.mxu0 %v581
    %634 = vmatpush.msra.mxu0 %v580
    %635 = vmatmul.f32.gmra.mxu0 %v403
    %v636 = vpop.f32.mrf.mxu0
    %v637 = vadd.f32 %v617, %v636
    %638 = vdwg.mxu0
    %v639 = vmul.f32 %v637, 0.01
    %v640 = vmax.f32 %v637, %v639
    %s641 = scalar_lea.vmem %s4, 128
    %v642 = vld [vmem:[%s641] sm:$0xff]
    %v643 = vld [vmem:[%s641 + $0x8] sm:$0xff]
    %v644 = vld [vmem:[%s641 + $0x10] sm:$0xff]
    %v645 = vld [vmem:[%s641 + $0x18] sm:$0xff]
    %v646 = vld [vmem:[%s641 + $0x20] sm:$0xff]
    %v647 = vld [vmem:[%s641 + $0x28] sm:$0xff]
    %v648 = vld [vmem:[%s641 + $0x30] sm:$0xff]
    %v649 = vld [vmem:[%s641 + $0x38] sm:$0xff]
    %v650 = vld [vmem:[%s641 + $0x40] sm:$0xff]
    %v651 = vld [vmem:[%s641 + $0x48] sm:$0xff]
    %v652 = vld [vmem:[%s641 + $0x50] sm:$0xff]
    %v653 = vld [vmem:[%s641 + $0x58] sm:$0xff]
    %v654 = vld [vmem:[%s641 + $0x60] sm:$0xff]
    %v655 = vld [vmem:[%s641 + $0x68] sm:$0xff]
    %v656 = vld [vmem:[%s641 + $0x70] sm:$0xff]
    %v657 = vld [vmem:[%s641 + $0x78] sm:$0xff]
    %v658 = vld [vmem:[%s596 + $0x1] sm:$0x1]
    %v659 = vperm.slane %v658, 0
    %660 = vmatpush.msra.mxu0 %v657
    %661 = vmatpush.msra.mxu0 %v656
    %662 = vmatpush.msra.mxu0 %v655
    %663 = vmatpush.msra.mxu0 %v654
    %664 = vmatpush.msra.mxu0 %v653
    %665 = vmatpush.msra.mxu0 %v652
    %666 = vmatpush.msra.mxu0 %v651
    %667 = vmatpush.msra.mxu0 %v650
    %668 = vmatpush.msra.mxu0 %v649
    %669 = vmatpush.msra.mxu0 %v648
    %670 = vmatpush.msra.mxu0 %v647
    %671 = vmatpush.msra.mxu0 %v646
    %672 = vmatpush.msra.mxu0 %v645
    %673 = vmatpush.msra.mxu0 %v644
    %674 = vmatpush.msra.mxu0 %v643
    %675 = vmatpush.msra.mxu0 %v642
    %676 = vmatmul.f32.gmra.mxu0 %v640
    %v677 = vpop.f32.mrf.mxu0
    %v678 = vadd.f32 %v659, %v677
    %679 = vdwg.mxu0
    %v680 = vmul.f32 %v678, 0.01
    %v681 = vmax.f32 %v678, %v680
    %s682 = scalar_lea.vmem %s5, 64
    %v683 = vld [vmem:[%s682] sm:$0xff]
    %v684 = vld [vmem:[%s682 + $0x8] sm:$0xff]
    %v685 = vld [vmem:[%s682 + $0x10] sm:$0xff]
    %v686 = vld [vmem:[%s682 + $0x18] sm:$0xff]
    %v687 = vld [vmem:[%s682 + $0x20] sm:$0xff]
    %v688 = vld [vmem:[%s682 + $0x28] sm:$0xff]
    %v689 = vld [vmem:[%s682 + $0x30] sm:$0xff]
    %v690 = vld [vmem:[%s682 + $0x38] sm:$0xff]
    %v691 = vld [vmem:[%s596 + $0x2] sm:$0x1]
    %v692 = vperm.slane %v691, 0
    %v694 = vsel %vm538, %v681, 0
    %696 = vmatpush.msra.mxu0 0.0
    %697 = vmatpush.msra.mxu0 0.0
    %698 = vmatpush.msra.mxu0 0.0
    %699 = vmatpush.msra.mxu0 0.0
    %700 = vmatpush.msra.mxu0 0.0
    %701 = vmatpush.msra.mxu0 0.0
    %702 = vmatpush.msra.mxu0 0.0
    %703 = vmatpush.msra.mxu0 0.0
    %704 = vmatpush.msra.mxu0 %v690
    %705 = vmatpush.msra.mxu0 %v689
    %706 = vmatpush.msra.mxu0 %v688
    %707 = vmatpush.msra.mxu0 %v687
    %708 = vmatpush.msra.mxu0 %v686
    %709 = vmatpush.msra.mxu0 %v685
    %710 = vmatpush.msra.mxu0 %v684
    %711 = vmatpush.msra.mxu0 %v683
    %712 = vmatmul.f32.gmra.mxu0 %v694
    %v713 = vpop.f32.mrf.mxu0
    %v714 = vadd.f32 %v692, %v713
    %715 = vdwg.mxu0
    %vm716 = vcmp.gt.f32.partialorder %v714, 20.0
    %v717 = vmin.f32 %v714, 20.0
    %v718 = vmul.f32 %v717, 1.442695
    %v719 = vpow.pop %v718
    %v720 = vadd.f32 %v719, 1.0
    %v721 = vlog2.pop %v720
    %v722 = vmul.f32 %v721, 0.6931472
    %v723 = vsel %vm716, %v714, %v722
    %v724 = vlaneseq
    %v725 = vand.u32 %v724, 127
    %vm726 = vcmp.lt.s32.totalorder %v725, 4
    %v727 = vsel %vm726, 1, 0
    %vm728 = vcmp.eq.s32.totalorder %v727, 1
    %v729 = vsel %vm728, %v723, 0.0
    %s730 = scalar_lea.vmem %s7, 8
    %731 = vst [vmem:[%s730] sm:$0xff] %v729
    %s732 = scalar_lea.vmem [#allocation2], 512
    %v733 = vld [vmem:[%s732] sm:$0xff]
    %v734 = vld [vmem:[%s732 + $0x8] sm:$0xff]
    %v735 = vld [vmem:[%s732 + $0x10] sm:$0xff]
    %v736 = vld [vmem:[%s732 + $0x18] sm:$0xff]
    %v737 = vld [vmem:[%s732 + $0x20] sm:$0xff]
    %v738 = vld [vmem:[%s732 + $0x28] sm:$0xff]
    %v739 = vld [vmem:[%s732 + $0x30] sm:$0xff]
    %v740 = vld [vmem:[%s732 + $0x38] sm:$0xff]
    %v741 = vld [vmem:[%s732 + $0x40] sm:$0xff]
    %v742 = vld [vmem:[%s732 + $0x48] sm:$0xff]
    %v743 = vld [vmem:[%s732 + $0x50] sm:$0xff]
    %v744 = vld [vmem:[%s732 + $0x58] sm:$0xff]
    %v745 = vld [vmem:[%s732 + $0x60] sm:$0xff]
    %v746 = vld [vmem:[%s732 + $0x68] sm:$0xff]
    %v747 = vld [vmem:[%s732 + $0x70] sm:$0xff]
    %v748 = vld [vmem:[%s732 + $0x78] sm:$0xff]
    %v749 = vld [vmem:[%s732 + $0x80] sm:$0xff]
    %v750 = vld [vmem:[%s732 + $0x88] sm:$0xff]
    %v751 = vld [vmem:[%s732 + $0x90] sm:$0xff]
    %v752 = vld [vmem:[%s732 + $0x98] sm:$0xff]
    %v753 = vld [vmem:[%s732 + $0xa0] sm:$0xff]
    %v754 = vld [vmem:[%s732 + $0xa8] sm:$0xff]
    %v755 = vld [vmem:[%s732 + $0xb0] sm:$0xff]
    %v756 = vld [vmem:[%s732 + $0xb8] sm:$0xff]
    %v757 = vld [vmem:[%s732 + $0xc0] sm:$0xff]
    %v758 = vld [vmem:[%s732 + $0xc8] sm:$0xff]
    %v759 = vld [vmem:[%s732 + $0xd0] sm:$0xff]
    %v760 = vld [vmem:[%s732 + $0xd8] sm:$0xff]
    %v761 = vld [vmem:[%s732 + $0xe0] sm:$0xff]
    %v762 = vld [vmem:[%s732 + $0xe8] sm:$0xff]
    %v763 = vld [vmem:[%s732 + $0xf0] sm:$0xff]
    %v764 = vld [vmem:[%s732 + $0xf8] sm:$0xff]
    %s765 = scalar_lea.vmem %s6, 8
    %v766 = vld [vmem:[%s765] sm:$0x1]
    %v767 = vperm.slane %v766, 0
    %768 = vmatpush.msra.mxu0 %v748
    %769 = vmatpush.msra.mxu0 %v747
    %770 = vmatpush.msra.mxu0 %v746
    %771 = vmatpush.msra.mxu0 %v745
    %772 = vmatpush.msra.mxu0 %v744
    %773 = vmatpush.msra.mxu0 %v743
    %774 = vmatpush.msra.mxu0 %v742
    %775 = vmatpush.msra.mxu0 %v741
    %776 = vmatpush.msra.mxu0 %v740
    %777 = vmatpush.msra.mxu0 %v739
    %778 = vmatpush.msra.mxu0 %v738
    %779 = vmatpush.msra.mxu0 %v737
    %780 = vmatpush.msra.mxu0 %v736
    %781 = vmatpush.msra.mxu0 %v735
    %782 = vmatpush.msra.mxu0 %v734
    %783 = vmatpush.msra.mxu0 %v733
    %784 = vmatmul.f32.gmra.mxu0 %v404
    %v785 = vpop.f32.mrf.mxu0
    %v786 = vadd.f32 %v767, %v785
    %787 = vdwg.mxu0
    %788 = vmatpush.msra.mxu0 %v764
    %789 = vmatpush.msra.mxu0 %v763
    %790 = vmatpush.msra.mxu0 %v762
    %791 = vmatpush.msra.mxu0 %v761
    %792 = vmatpush.msra.mxu0 %v760
    %793 = vmatpush.msra.mxu0 %v759
    %794 = vmatpush.msra.mxu0 %v758
    %795 = vmatpush.msra.mxu0 %v757
    %796 = vmatpush.msra.mxu0 %v756
    %797 = vmatpush.msra.mxu0 %v755
    %798 = vmatpush.msra.mxu0 %v754
    %799 = vmatpush.msra.mxu0 %v753
    %800 = vmatpush.msra.mxu0 %v752
    %801 = vmatpush.msra.mxu0 %v751
    %802 = vmatpush.msra.mxu0 %v750
    %803 = vmatpush.msra.mxu0 %v749
    %804 = vmatmul.f32.gmra.mxu0 %v405
    %v805 = vpop.f32.mrf.mxu0
    %v806 = vadd.f32 %v786, %v805
    %807 = vdwg.mxu0
    %v808 = vmul.f32 %v806, 0.01
    %v809 = vmax.f32 %v806, %v808
    %s810 = scalar_lea.vmem %s4, 256
    %v811 = vld [vmem:[%s810] sm:$0xff]
    %v812 = vld [vmem:[%s810 + $0x8] sm:$0xff]
    %v813 = vld [vmem:[%s810 + $0x10] sm:$0xff]
    %v814 = vld [vmem:[%s810 + $0x18] sm:$0xff]
    %v815 = vld [vmem:[%s810 + $0x20] sm:$0xff]
    %v816 = vld [vmem:[%s810 + $0x28] sm:$0xff]
    %v817 = vld [vmem:[%s810 + $0x30] sm:$0xff]
    %v818 = vld [vmem:[%s810 + $0x38] sm:$0xff]
    %v819 = vld [vmem:[%s810 + $0x40] sm:$0xff]
    %v820 = vld [vmem:[%s810 + $0x48] sm:$0xff]
    %v821 = vld [vmem:[%s810 + $0x50] sm:$0xff]
    %v822 = vld [vmem:[%s810 + $0x58] sm:$0xff]
    %v823 = vld [vmem:[%s810 + $0x60] sm:$0xff]
    %v824 = vld [vmem:[%s810 + $0x68] sm:$0xff]
    %v825 = vld [vmem:[%s810 + $0x70] sm:$0xff]
    %v826 = vld [vmem:[%s810 + $0x78] sm:$0xff]
    %v827 = vld [vmem:[%s765 + $0x1] sm:$0x1]
    %v828 = vperm.slane %v827, 0
    %829 = vmatpush.msra.mxu0 %v826
    %830 = vmatpush.msra.mxu0 %v825
    %831 = vmatpush.msra.mxu0 %v824
    %832 = vmatpush.msra.mxu0 %v823
    %833 = vmatpush.msra.mxu0 %v822
    %834 = vmatpush.msra.mxu0 %v821
    %835 = vmatpush.msra.mxu0 %v820
    %836 = vmatpush.msra.mxu0 %v819
    %837 = vmatpush.msra.mxu0 %v818
    %838 = vmatpush.msra.mxu0 %v817
    %839 = vmatpush.msra.mxu0 %v816
    %840 = vmatpush.msra.mxu0 %v815
    %841 = vmatpush.msra.mxu0 %v814
    %842 = vmatpush.msra.mxu0 %v813
    %843 = vmatpush.msra.mxu0 %v812
    %844 = vmatpush.msra.mxu0 %v811
    %845 = vmatmul.f32.gmra.mxu0 %v809
    %v846 = vpop.f32.mrf.mxu0
    %v847 = vadd.f32 %v828, %v846
    %848 = vdwg.mxu0
    %v849 = vmul.f32 %v847, 0.01
    %v850 = vmax.f32 %v847, %v849
    %s851 = scalar_lea.vmem %s5, 128
    %v852 = vld [vmem:[%s851] sm:$0xff]
    %v853 = vld [vmem:[%s851 + $0x8] sm:$0xff]
    %v854 = vld [vmem:[%s851 + $0x10] sm:$0xff]
    %v855 = vld [vmem:[%s851 + $0x18] sm:$0xff]
    %v856 = vld [vmem:[%s851 + $0x20] sm:$0xff]
    %v857 = vld [vmem:[%s851 + $0x28] sm:$0xff]
    %v858 = vld [vmem:[%s851 + $0x30] sm:$0xff]
    %v859 = vld [vmem:[%s851 + $0x38] sm:$0xff]
    %v860 = vld [vmem:[%s765 + $0x2] sm:$0x1]
    %v861 = vperm.slane %v860, 0
    %v863 = vsel %vm538, %v850, 0
    %865 = vmatpush.msra.mxu0 0.0
    %866 = vmatpush.msra.mxu0 0.0
    %867 = vmatpush.msra.mxu0 0.0
    %868 = vmatpush.msra.mxu0 0.0
    %869 = vmatpush.msra.mxu0 0.0
    %870 = vmatpush.msra.mxu0 0.0
    %871 = vmatpush.msra.mxu0 0.0
    %872 = vmatpush.msra.mxu0 0.0
    %873 = vmatpush.msra.mxu0 %v859
    %874 = vmatpush.msra.mxu0 %v858
    %875 = vmatpush.msra.mxu0 %v857
    %876 = vmatpush.msra.mxu0 %v856
    %877 = vmatpush.msra.mxu0 %v855
    %878 = vmatpush.msra.mxu0 %v854
    %879 = vmatpush.msra.mxu0 %v853
    %880 = vmatpush.msra.mxu0 %v852
    %881 = vmatmul.f32.gmra.mxu0 %v863
    %v882 = vpop.f32.mrf.mxu0
    %v883 = vadd.f32 %v861, %v882
    %884 = vdwg.mxu0
    %s885 = scalar_lea.vmem %s7, 16
    %886 = vst [vmem:[%s885] sm:$0xff] %v883
    %s887 = scalar_lea.vmem [#allocation2], 768
    %v888 = vld [vmem:[%s887] sm:$0xff]
    %v889 = vld [vmem:[%s887 + $0x8] sm:$0xff]
    %v890 = vld [vmem:[%s887 + $0x10] sm:$0xff]
    %v891 = vld [vmem:[%s887 + $0x18] sm:$0xff]
    %v892 = vld [vmem:[%s887 + $0x20] sm:$0xff]
    %v893 = vld [vmem:[%s887 + $0x28] sm:$0xff]
    %v894 = vld [vmem:[%s887 + $0x30] sm:$0xff]
    %v895 = vld [vmem:[%s887 + $0x38] sm:$0xff]
    %v896 = vld [vmem:[%s887 + $0x40] sm:$0xff]
    %v897 = vld [vmem:[%s887 + $0x48] sm:$0xff]
    %v898 = vld [vmem:[%s887 + $0x50] sm:$0xff]
    %v899 = vld [vmem:[%s887 + $0x58] sm:$0xff]
    %v900 = vld [vmem:[%s887 + $0x60] sm:$0xff]
    %v901 = vld [vmem:[%s887 + $0x68] sm:$0xff]
    %v902 = vld [vmem:[%s887 + $0x70] sm:$0xff]
    %v903 = vld [vmem:[%s887 + $0x78] sm:$0xff]
    %v904 = vld [vmem:[%s887 + $0x80] sm:$0xff]
    %v905 = vld [vmem:[%s887 + $0x88] sm:$0xff]
    %v906 = vld [vmem:[%s887 + $0x90] sm:$0xff]
    %v907 = vld [vmem:[%s887 + $0x98] sm:$0xff]
    %v908 = vld [vmem:[%s887 + $0xa0] sm:$0xff]
    %v909 = vld [vmem:[%s887 + $0xa8] sm:$0xff]
    %v910 = vld [vmem:[%s887 + $0xb0] sm:$0xff]
    %v911 = vld [vmem:[%s887 + $0xb8] sm:$0xff]
    %v912 = vld [vmem:[%s887 + $0xc0] sm:$0xff]
    %v913 = vld [vmem:[%s887 + $0xc8] sm:$0xff]
    %v914 = vld [vmem:[%s887 + $0xd0] sm:$0xff]
    %v915 = vld [vmem:[%s887 + $0xd8] sm:$0xff]
    %v916 = vld [vmem:[%s887 + $0xe0] sm:$0xff]
    %v917 = vld [vmem:[%s887 + $0xe8] sm:$0xff]
    %v918 = vld [vmem:[%s887 + $0xf0] sm:$0xff]
    %v919 = vld [vmem:[%s887 + $0xf8] sm:$0xff]
    %s920 = scalar_lea.vmem %s6, 12
    %v921 = vld [vmem:[%s920] sm:$0x1]
    %v922 = vperm.slane %v921, 0
    %923 = vmatpush.msra.mxu0 %v903
    %924 = vmatpush.msra.mxu0 %v902
    %925 = vmatpush.msra.mxu0 %v901
    %926 = vmatpush.msra.mxu0 %v900
    %927 = vmatpush.msra.mxu0 %v899
    %928 = vmatpush.msra.mxu0 %v898
    %929 = vmatpush.msra.mxu0 %v897
    %930 = vmatpush.msra.mxu0 %v896
    %931 = vmatpush.msra.mxu0 %v895
    %932 = vmatpush.msra.mxu0 %v894
    %933 = vmatpush.msra.mxu0 %v893
    %934 = vmatpush.msra.mxu0 %v892
    %935 = vmatpush.msra.mxu0 %v891
    %936 = vmatpush.msra.mxu0 %v890
    %937 = vmatpush.msra.mxu0 %v889
    %938 = vmatpush.msra.mxu0 %v888
    %939 = vmatmul.f32.gmra.mxu0 %v406
    %v940 = vpop.f32.mrf.mxu0
    %v941 = vadd.f32 %v922, %v940
    %942 = vdwg.mxu0
    %943 = vmatpush.msra.mxu0 %v919
    %944 = vmatpush.msra.mxu0 %v918
    %945 = vmatpush.msra.mxu0 %v917
    %946 = vmatpush.msra.mxu0 %v916
    %947 = vmatpush.msra.mxu0 %v915
    %948 = vmatpush.msra.mxu0 %v914
    %949 = vmatpush.msra.mxu0 %v913
    %950 = vmatpush.msra.mxu0 %v912
    %951 = vmatpush.msra.mxu0 %v911
    %952 = vmatpush.msra.mxu0 %v910
    %953 = vmatpush.msra.mxu0 %v909
    %954 = vmatpush.msra.mxu0 %v908
    %955 = vmatpush.msra.mxu0 %v907
    %956 = vmatpush.msra.mxu0 %v906
    %957 = vmatpush.msra.mxu0 %v905
    %958 = vmatpush.msra.mxu0 %v904
    %959 = vmatmul.f32.gmra.mxu0 %v407
    %v960 = vpop.f32.mrf.mxu0
    %v961 = vadd.f32 %v941, %v960
    %962 = vdwg.mxu0
    %v963 = vmul.f32 %v961, 0.01
    %v964 = vmax.f32 %v961, %v963
    %s965 = scalar_lea.vmem %s4, 384
    %v966 = vld [vmem:[%s965] sm:$0xff]
    %v967 = vld [vmem:[%s965 + $0x8] sm:$0xff]
    %v968 = vld [vmem:[%s965 + $0x10] sm:$0xff]
    %v969 = vld [vmem:[%s965 + $0x18] sm:$0xff]
    %v970 = vld [vmem:[%s965 + $0x20] sm:$0xff]
    %v971 = vld [vmem:[%s965 + $0x28] sm:$0xff]
    %v972 = vld [vmem:[%s965 + $0x30] sm:$0xff]
    %v973 = vld [vmem:[%s965 + $0x38] sm:$0xff]
    %v974 = vld [vmem:[%s965 + $0x40] sm:$0xff]
    %v975 = vld [vmem:[%s965 + $0x48] sm:$0xff]
    %v976 = vld [vmem:[%s965 + $0x50] sm:$0xff]
    %v977 = vld [vmem:[%s965 + $0x58] sm:$0xff]
    %v978 = vld [vmem:[%s965 + $0x60] sm:$0xff]
    %v979 = vld [vmem:[%s965 + $0x68] sm:$0xff]
    %v980 = vld [vmem:[%s965 + $0x70] sm:$0xff]
    %v981 = vld [vmem:[%s965 + $0x78] sm:$0xff]
    %v982 = vld [vmem:[%s920 + $0x1] sm:$0x1]
    %v983 = vperm.slane %v982, 0
    %984 = vmatpush.msra.mxu0 %v981
    %985 = vmatpush.msra.mxu0 %v980
    %986 = vmatpush.msra.mxu0 %v979
    %987 = vmatpush.msra.mxu0 %v978
    %988 = vmatpush.msra.mxu0 %v977
    %989 = vmatpush.msra.mxu0 %v976
    %990 = vmatpush.msra.mxu0 %v975
    %991 = vmatpush.msra.mxu0 %v974
    %992 = vmatpush.msra.mxu0 %v973
    %993 = vmatpush.msra.mxu0 %v972
    %994 = vmatpush.msra.mxu0 %v971
    %995 = vmatpush.msra.mxu0 %v970
    %996 = vmatpush.msra.mxu0 %v969
    %997 = vmatpush.msra.mxu0 %v968
    %998 = vmatpush.msra.mxu0 %v967
    %999 = vmatpush.msra.mxu0 %v966
    %1000 = vmatmul.f32.gmra.mxu0 %v964
    %v1001 = vpop.f32.mrf.mxu0
    %v1002 = vadd.f32 %v983, %v1001
    %1003 = vdwg.mxu0
    %v1004 = vmul.f32 %v1002, 0.01
    %v1005 = vmax.f32 %v1002, %v1004
    %s1006 = scalar_lea.vmem %s5, 192
    %v1007 = vld [vmem:[%s1006] sm:$0xff]
    %v1008 = vld [vmem:[%s1006 + $0x8] sm:$0xff]
    %v1009 = vld [vmem:[%s1006 + $0x10] sm:$0xff]
    %v1010 = vld [vmem:[%s1006 + $0x18] sm:$0xff]
    %v1011 = vld [vmem:[%s1006 + $0x20] sm:$0xff]
    %v1012 = vld [vmem:[%s1006 + $0x28] sm:$0xff]
    %v1013 = vld [vmem:[%s1006 + $0x30] sm:$0xff]
    %v1014 = vld [vmem:[%s1006 + $0x38] sm:$0xff]
    %v1015 = vld [vmem:[%s920 + $0x2] sm:$0x1]
    %v1016 = vperm.slane %v1015, 0
    %v1018 = vsel %vm538, %v1005, 0
    %1020 = vmatpush.msra.mxu0 0.0
    %1021 = vmatpush.msra.mxu0 0.0
    %1022 = vmatpush.msra.mxu0 0.0
    %1023 = vmatpush.msra.mxu0 0.0
    %1024 = vmatpush.msra.mxu0 0.0
    %1025 = vmatpush.msra.mxu0 0.0
    %1026 = vmatpush.msra.mxu0 0.0
    %1027 = vmatpush.msra.mxu0 0.0
    %1028 = vmatpush.msra.mxu0 %v1014
    %1029 = vmatpush.msra.mxu0 %v1013
    %1030 = vmatpush.msra.mxu0 %v1012
    %1031 = vmatpush.msra.mxu0 %v1011
    %1032 = vmatpush.msra.mxu0 %v1010
    %1033 = vmatpush.msra.mxu0 %v1009
    %1034 = vmatpush.msra.mxu0 %v1008
    %1035 = vmatpush.msra.mxu0 %v1007
    %1036 = vmatmul.f32.gmra.mxu0 %v1018
    %v1037 = vpop.f32.mrf.mxu0
    %v1038 = vadd.f32 %v1016, %v1037
    %1039 = vdwg.mxu0
    %vm1040 = vcmp.gt.f32.partialorder %v1038, 20.0
    %v1041 = vmin.f32 %v1038, 20.0
    %v1042 = vmul.f32 %v1041, 1.442695
    %v1043 = vpow.pop %v1042
    %v1044 = vadd.f32 %v1043, 1.0
    %v1045 = vlog2.pop %v1044
    %v1046 = vmul.f32 %v1045, 0.6931472
    %v1047 = vsel %vm1040, %v1038, %v1046
    %v1048 = vsel %vm728, %v1047, 0.0
    %s1049 = scalar_lea.vmem %s7, 24
    %1050 = vst [vmem:[%s1049] sm:$0xff] %v1048
    %s1051 = scalar_lea.vmem [#allocation2], 1024
    %v1052 = vld [vmem:[%s1051] sm:$0xff]
    %v1053 = vld [vmem:[%s1051 + $0x8] sm:$0xff]
    %v1054 = vld [vmem:[%s1051 + $0x10] sm:$0xff]
    %v1055 = vld [vmem:[%s1051 + $0x18] sm:$0xff]
    %v1056 = vld [vmem:[%s1051 + $0x20] sm:$0xff]
    %v1057 = vld [vmem:[%s1051 + $0x28] sm:$0xff]
    %v1058 = vld [vmem:[%s1051 + $0x30] sm:$0xff]
    %v1059 = vld [vmem:[%s1051 + $0x38] sm:$0xff]
    %v1060 = vld [vmem:[%s1051 + $0x40] sm:$0xff]
    %v1061 = vld [vmem:[%s1051 + $0x48] sm:$0xff]
    %v1062 = vld [vmem:[%s1051 + $0x50] sm:$0xff]
    %v1063 = vld [vmem:[%s1051 + $0x58] sm:$0xff]
    %v1064 = vld [vmem:[%s1051 + $0x60] sm:$0xff]
    %v1065 = vld [vmem:[%s1051 + $0x68] sm:$0xff]
    %v1066 = vld [vmem:[%s1051 + $0x70] sm:$0xff]
    %v1067 = vld [vmem:[%s1051 + $0x78] sm:$0xff]
    %v1068 = vld [vmem:[%s1051 + $0x80] sm:$0xff]
    %v1069 = vld [vmem:[%s1051 + $0x88] sm:$0xff]
    %v1070 = vld [vmem:[%s1051 + $0x90] sm:$0xff]
    %v1071 = vld [vmem:[%s1051 + $0x98] sm:$0xff]
    %v1072 = vld [vmem:[%s1051 + $0xa0] sm:$0xff]
    %v1073 = vld [vmem:[%s1051 + $0xa8] sm:$0xff]
    %v1074 = vld [vmem:[%s1051 + $0xb0] sm:$0xff]
    %v1075 = vld [vmem:[%s1051 + $0xb8] sm:$0xff]
    %v1076 = vld [vmem:[%s1051 + $0xc0] sm:$0xff]
    %v1077 = vld [vmem:[%s1051 + $0xc8] sm:$0xff]
    %v1078 = vld [vmem:[%s1051 + $0xd0] sm:$0xff]
    %v1079 = vld [vmem:[%s1051 + $0xd8] sm:$0xff]
    %v1080 = vld [vmem:[%s1051 + $0xe0] sm:$0xff]
    %v1081 = vld [vmem:[%s1051 + $0xe8] sm:$0xff]
    %v1082 = vld [vmem:[%s1051 + $0xf0] sm:$0xff]
    %v1083 = vld [vmem:[%s1051 + $0xf8] sm:$0xff]
    %s1084 = scalar_lea.vmem %s6, 16
    %v1085 = vld [vmem:[%s1084] sm:$0x1]
    %v1086 = vperm.slane %v1085, 0
    %1087 = vmatpush.msra.mxu0 %v1067
    %1088 = vmatpush.msra.mxu0 %v1066
    %1089 = vmatpush.msra.mxu0 %v1065
    %1090 = vmatpush.msra.mxu0 %v1064
    %1091 = vmatpush.msra.mxu0 %v1063
    %1092 = vmatpush.msra.mxu0 %v1062
    %1093 = vmatpush.msra.mxu0 %v1061
    %1094 = vmatpush.msra.mxu0 %v1060
    %1095 = vmatpush.msra.mxu0 %v1059
    %1096 = vmatpush.msra.mxu0 %v1058
    %1097 = vmatpush.msra.mxu0 %v1057
    %1098 = vmatpush.msra.mxu0 %v1056
    %1099 = vmatpush.msra.mxu0 %v1055
    %1100 = vmatpush.msra.mxu0 %v1054
    %1101 = vmatpush.msra.mxu0 %v1053
    %1102 = vmatpush.msra.mxu0 %v1052
    %1103 = vmatmul.f32.gmra.mxu0 %v408
    %v1104 = vpop.f32.mrf.mxu0
    %v1105 = vadd.f32 %v1086, %v1104
    %1106 = vdwg.mxu0
    %1107 = vmatpush.msra.mxu0 %v1083
    %1108 = vmatpush.msra.mxu0 %v1082
    %1109 = vmatpush.msra.mxu0 %v1081
    %1110 = vmatpush.msra.mxu0 %v1080
    %1111 = vmatpush.msra.mxu0 %v1079
    %1112 = vmatpush.msra.mxu0 %v1078
    %1113 = vmatpush.msra.mxu0 %v1077
    %1114 = vmatpush.msra.mxu0 %v1076
    %1115 = vmatpush.msra.mxu0 %v1075
    %1116 = vmatpush.msra.mxu0 %v1074
    %1117 = vmatpush.msra.mxu0 %v1073
    %1118 = vmatpush.msra.mxu0 %v1072
    %1119 = vmatpush.msra.mxu0 %v1071
    %1120 = vmatpush.msra.mxu0 %v1070
    %1121 = vmatpush.msra.mxu0 %v1069
    %1122 = vmatpush.msra.mxu0 %v1068
    %1123 = vmatmul.f32.gmra.mxu0 %v409
    %v1124 = vpop.f32.mrf.mxu0
    %v1125 = vadd.f32 %v1105, %v1124
    %1126 = vdwg.mxu0
    %v1127 = vmul.f32 %v1125, 0.01
    %v1128 = vmax.f32 %v1125, %v1127
    %s1129 = scalar_lea.vmem %s4, 512
    %v1130 = vld [vmem:[%s1129] sm:$0xff]
    %v1131 = vld [vmem:[%s1129 + $0x8] sm:$0xff]
    %v1132 = vld [vmem:[%s1129 + $0x10] sm:$0xff]
    %v1133 = vld [vmem:[%s1129 + $0x18] sm:$0xff]
    %v1134 = vld [vmem:[%s1129 + $0x20] sm:$0xff]
    %v1135 = vld [vmem:[%s1129 + $0x28] sm:$0xff]
    %v1136 = vld [vmem:[%s1129 + $0x30] sm:$0xff]
    %v1137 = vld [vmem:[%s1129 + $0x38] sm:$0xff]
    %v1138 = vld [vmem:[%s1129 + $0x40] sm:$0xff]
    %v1139 = vld [vmem:[%s1129 + $0x48] sm:$0xff]
    %v1140 = vld [vmem:[%s1129 + $0x50] sm:$0xff]
    %v1141 = vld [vmem:[%s1129 + $0x58] sm:$0xff]
    %v1142 = vld [vmem:[%s1129 + $0x60] sm:$0xff]
    %v1143 = vld [vmem:[%s1129 + $0x68] sm:$0xff]
    %v1144 = vld [vmem:[%s1129 + $0x70] sm:$0xff]
    %v1145 = vld [vmem:[%s1129 + $0x78] sm:$0xff]
    %v1146 = vld [vmem:[%s1084 + $0x1] sm:$0x1]
    %v1147 = vperm.slane %v1146, 0
    %1148 = vmatpush.msra.mxu0 %v1145
    %1149 = vmatpush.msra.mxu0 %v1144
    %1150 = vmatpush.msra.mxu0 %v1143
    %1151 = vmatpush.msra.mxu0 %v1142
    %1152 = vmatpush.msra.mxu0 %v1141
    %1153 = vmatpush.msra.mxu0 %v1140
    %1154 = vmatpush.msra.mxu0 %v1139
    %1155 = vmatpush.msra.mxu0 %v1138
    %1156 = vmatpush.msra.mxu0 %v1137
    %1157 = vmatpush.msra.mxu0 %v1136
    %1158 = vmatpush.msra.mxu0 %v1135
    %1159 = vmatpush.msra.mxu0 %v1134
    %1160 = vmatpush.msra.mxu0 %v1133
    %1161 = vmatpush.msra.mxu0 %v1132
    %1162 = vmatpush.msra.mxu0 %v1131
    %1163 = vmatpush.msra.mxu0 %v1130
    %1164 = vmatmul.f32.gmra.mxu0 %v1128
    %v1165 = vpop.f32.mrf.mxu0
    %v1166 = vadd.f32 %v1147, %v1165
    %1167 = vdwg.mxu0
    %v1168 = vmul.f32 %v1166, 0.01
    %v1169 = vmax.f32 %v1166, %v1168
    %s1170 = scalar_lea.vmem %s5, 256
    %v1171 = vld [vmem:[%s1170] sm:$0xff]
    %v1172 = vld [vmem:[%s1170 + $0x8] sm:$0xff]
    %v1173 = vld [vmem:[%s1170 + $0x10] sm:$0xff]
    %v1174 = vld [vmem:[%s1170 + $0x18] sm:$0xff]
    %v1175 = vld [vmem:[%s1170 + $0x20] sm:$0xff]
    %v1176 = vld [vmem:[%s1170 + $0x28] sm:$0xff]
    %v1177 = vld [vmem:[%s1170 + $0x30] sm:$0xff]
    %v1178 = vld [vmem:[%s1170 + $0x38] sm:$0xff]
    %v1179 = vld [vmem:[%s1084 + $0x2] sm:$0x1]
    %v1180 = vperm.slane %v1179, 0
    %v1182 = vsel %vm538, %v1169, 0
    %1184 = vmatpush.msra.mxu0 0.0
    %1185 = vmatpush.msra.mxu0 0.0
    %1186 = vmatpush.msra.mxu0 0.0
    %1187 = vmatpush.msra.mxu0 0.0
    %1188 = vmatpush.msra.mxu0 0.0
    %1189 = vmatpush.msra.mxu0 0.0
    %1190 = vmatpush.msra.mxu0 0.0
    %1191 = vmatpush.msra.mxu0 0.0
    %1192 = vmatpush.msra.mxu0 %v1178
    %1193 = vmatpush.msra.mxu0 %v1177
    %1194 = vmatpush.msra.mxu0 %v1176
    %1195 = vmatpush.msra.mxu0 %v1175
    %1196 = vmatpush.msra.mxu0 %v1174
    %1197 = vmatpush.msra.mxu0 %v1173
    %1198 = vmatpush.msra.mxu0 %v1172
    %1199 = vmatpush.msra.mxu0 %v1171
    %1200 = vmatmul.f32.gmra.mxu0 %v1182
    %v1201 = vpop.f32.mrf.mxu0
    %v1202 = vadd.f32 %v1180, %v1201
    %1203 = vdwg.mxu0
    %s1204 = scalar_lea.vmem %s7, 32
    %1205 = vst [vmem:[%s1204] sm:$0xff] %v1202
    %s1206 = scalar_lea.vmem [#allocation2], 1280
    %v1207 = vld [vmem:[%s1206] sm:$0xff]
    %v1208 = vld [vmem:[%s1206 + $0x8] sm:$0xff]
    %v1209 = vld [vmem:[%s1206 + $0x10] sm:$0xff]
    %v1210 = vld [vmem:[%s1206 + $0x18] sm:$0xff]
    %v1211 = vld [vmem:[%s1206 + $0x20] sm:$0xff]
    %v1212 = vld [vmem:[%s1206 + $0x28] sm:$0xff]
    %v1213 = vld [vmem:[%s1206 + $0x30] sm:$0xff]
    %v1214 = vld [vmem:[%s1206 + $0x38] sm:$0xff]
    %v1215 = vld [vmem:[%s1206 + $0x40] sm:$0xff]
    %v1216 = vld [vmem:[%s1206 + $0x48] sm:$0xff]
    %v1217 = vld [vmem:[%s1206 + $0x50] sm:$0xff]
    %v1218 = vld [vmem:[%s1206 + $0x58] sm:$0xff]
    %v1219 = vld [vmem:[%s1206 + $0x60] sm:$0xff]
    %v1220 = vld [vmem:[%s1206 + $0x68] sm:$0xff]
    %v1221 = vld [vmem:[%s1206 + $0x70] sm:$0xff]
    %v1222 = vld [vmem:[%s1206 + $0x78] sm:$0xff]
    %v1223 = vld [vmem:[%s1206 + $0x80] sm:$0xff]
    %v1224 = vld [vmem:[%s1206 + $0x88] sm:$0xff]
    %v1225 = vld [vmem:[%s1206 + $0x90] sm:$0xff]
    %v1226 = vld [vmem:[%s1206 + $0x98] sm:$0xff]
    %v1227 = vld [vmem:[%s1206 + $0xa0] sm:$0xff]
    %v1228 = vld [vmem:[%s1206 + $0xa8] sm:$0xff]
    %v1229 = vld [vmem:[%s1206 + $0xb0] sm:$0xff]
    %v1230 = vld [vmem:[%s1206 + $0xb8] sm:$0xff]
    %v1231 = vld [vmem:[%s1206 + $0xc0] sm:$0xff]
    %v1232 = vld [vmem:[%s1206 + $0xc8] sm:$0xff]
    %v1233 = vld [vmem:[%s1206 + $0xd0] sm:$0xff]
    %v1234 = vld [vmem:[%s1206 + $0xd8] sm:$0xff]
    %v1235 = vld [vmem:[%s1206 + $0xe0] sm:$0xff]
    %v1236 = vld [vmem:[%s1206 + $0xe8] sm:$0xff]
    %v1237 = vld [vmem:[%s1206 + $0xf0] sm:$0xff]
    %v1238 = vld [vmem:[%s1206 + $0xf8] sm:$0xff]
    %s1239 = scalar_lea.vmem %s6, 20
    %v1240 = vld [vmem:[%s1239] sm:$0x1]
    %v1241 = vperm.slane %v1240, 0
    %1242 = vmatpush.msra.mxu0 %v1222
    %1243 = vmatpush.msra.mxu0 %v1221
    %1244 = vmatpush.msra.mxu0 %v1220
    %1245 = vmatpush.msra.mxu0 %v1219
    %1246 = vmatpush.msra.mxu0 %v1218
    %1247 = vmatpush.msra.mxu0 %v1217
    %1248 = vmatpush.msra.mxu0 %v1216
    %1249 = vmatpush.msra.mxu0 %v1215
    %1250 = vmatpush.msra.mxu0 %v1214
    %1251 = vmatpush.msra.mxu0 %v1213
    %1252 = vmatpush.msra.mxu0 %v1212
    %1253 = vmatpush.msra.mxu0 %v1211
    %1254 = vmatpush.msra.mxu0 %v1210
    %1255 = vmatpush.msra.mxu0 %v1209
    %1256 = vmatpush.msra.mxu0 %v1208
    %1257 = vmatpush.msra.mxu0 %v1207
    %1258 = vmatmul.f32.gmra.mxu0 %v410
    %v1259 = vpop.f32.mrf.mxu0
    %v1260 = vadd.f32 %v1241, %v1259
    %1261 = vdwg.mxu0
    %1262 = vmatpush.msra.mxu0 %v1238
    %1263 = vmatpush.msra.mxu0 %v1237
    %1264 = vmatpush.msra.mxu0 %v1236
    %1265 = vmatpush.msra.mxu0 %v1235
    %1266 = vmatpush.msra.mxu0 %v1234
    %1267 = vmatpush.msra.mxu0 %v1233
    %1268 = vmatpush.msra.mxu0 %v1232
    %1269 = vmatpush.msra.mxu0 %v1231
    %1270 = vmatpush.msra.mxu0 %v1230
    %1271 = vmatpush.msra.mxu0 %v1229
    %1272 = vmatpush.msra.mxu0 %v1228
    %1273 = vmatpush.msra.mxu0 %v1227
    %1274 = vmatpush.msra.mxu0 %v1226
    %1275 = vmatpush.msra.mxu0 %v1225
    %1276 = vmatpush.msra.mxu0 %v1224
    %1277 = vmatpush.msra.mxu0 %v1223
    %1278 = vmatmul.f32.gmra.mxu0 %v411
    %v1279 = vpop.f32.mrf.mxu0
    %v1280 = vadd.f32 %v1260, %v1279
    %1281 = vdwg.mxu0
    %v1282 = vmul.f32 %v1280, 0.01
    %v1283 = vmax.f32 %v1280, %v1282
    %s1284 = scalar_lea.vmem %s4, 640
    %v1285 = vld [vmem:[%s1284] sm:$0xff]
    %v1286 = vld [vmem:[%s1284 + $0x8] sm:$0xff]
    %v1287 = vld [vmem:[%s1284 + $0x10] sm:$0xff]
    %v1288 = vld [vmem:[%s1284 + $0x18] sm:$0xff]
    %v1289 = vld [vmem:[%s1284 + $0x20] sm:$0xff]
    %v1290 = vld [vmem:[%s1284 + $0x28] sm:$0xff]
    %v1291 = vld [vmem:[%s1284 + $0x30] sm:$0xff]
    %v1292 = vld [vmem:[%s1284 + $0x38] sm:$0xff]
    %v1293 = vld [vmem:[%s1284 + $0x40] sm:$0xff]
    %v1294 = vld [vmem:[%s1284 + $0x48] sm:$0xff]
    %v1295 = vld [vmem:[%s1284 + $0x50] sm:$0xff]
    %v1296 = vld [vmem:[%s1284 + $0x58] sm:$0xff]
    %v1297 = vld [vmem:[%s1284 + $0x60] sm:$0xff]
    %v1298 = vld [vmem:[%s1284 + $0x68] sm:$0xff]
    %v1299 = vld [vmem:[%s1284 + $0x70] sm:$0xff]
    %v1300 = vld [vmem:[%s1284 + $0x78] sm:$0xff]
    %v1301 = vld [vmem:[%s1239 + $0x1] sm:$0x1]
    %v1302 = vperm.slane %v1301, 0
    %1303 = vmatpush.msra.mxu0 %v1300
    %1304 = vmatpush.msra.mxu0 %v1299
    %1305 = vmatpush.msra.mxu0 %v1298
    %1306 = vmatpush.msra.mxu0 %v1297
    %1307 = vmatpush.msra.mxu0 %v1296
    %1308 = vmatpush.msra.mxu0 %v1295
    %1309 = vmatpush.msra.mxu0 %v1294
    %1310 = vmatpush.msra.mxu0 %v1293
    %1311 = vmatpush.msra.mxu0 %v1292
    %1312 = vmatpush.msra.mxu0 %v1291
    %1313 = vmatpush.msra.mxu0 %v1290
    %1314 = vmatpush.msra.mxu0 %v1289
    %1315 = vmatpush.msra.mxu0 %v1288
    %1316 = vmatpush.msra.mxu0 %v1287
    %1317 = vmatpush.msra.mxu0 %v1286
    %1318 = vmatpush.msra.mxu0 %v1285
    %1319 = vmatmul.f32.gmra.mxu0 %v1283
    %v1320 = vpop.f32.mrf.mxu0
    %v1321 = vadd.f32 %v1302, %v1320
    %1322 = vdwg.mxu0
    %v1323 = vmul.f32 %v1321, 0.01
    %v1324 = vmax.f32 %v1321, %v1323
    %s1325 = scalar_lea.vmem %s5, 320
    %v1326 = vld [vmem:[%s1325] sm:$0xff]
    %v1327 = vld [vmem:[%s1325 + $0x8] sm:$0xff]
    %v1328 = vld [vmem:[%s1325 + $0x10] sm:$0xff]
    %v1329 = vld [vmem:[%s1325 + $0x18] sm:$0xff]
    %v1330 = vld [vmem:[%s1325 + $0x20] sm:$0xff]
    %v1331 = vld [vmem:[%s1325 + $0x28] sm:$0xff]
    %v1332 = vld [vmem:[%s1325 + $0x30] sm:$0xff]
    %v1333 = vld [vmem:[%s1325 + $0x38] sm:$0xff]
    %v1334 = vld [vmem:[%s1239 + $0x2] sm:$0x1]
    %v1335 = vperm.slane %v1334, 0
    %v1337 = vsel %vm538, %v1324, 0
    %1339 = vmatpush.msra.mxu0 0.0
    %1340 = vmatpush.msra.mxu0 0.0
    %1341 = vmatpush.msra.mxu0 0.0
    %1342 = vmatpush.msra.mxu0 0.0
    %1343 = vmatpush.msra.mxu0 0.0
    %1344 = vmatpush.msra.mxu0 0.0
    %1345 = vmatpush.msra.mxu0 0.0
    %1346 = vmatpush.msra.mxu0 0.0
    %1347 = vmatpush.msra.mxu0 %v1333
    %1348 = vmatpush.msra.mxu0 %v1332
    %1349 = vmatpush.msra.mxu0 %v1331
    %1350 = vmatpush.msra.mxu0 %v1330
    %1351 = vmatpush.msra.mxu0 %v1329
    %1352 = vmatpush.msra.mxu0 %v1328
    %1353 = vmatpush.msra.mxu0 %v1327
    %1354 = vmatpush.msra.mxu0 %v1326
    %1355 = vmatmul.f32.gmra.mxu0 %v1337
    %v1356 = vpop.f32.mrf.mxu0
    %v1357 = vadd.f32 %v1335, %v1356
    %1358 = vdwg.mxu0
    %vm1359 = vcmp.gt.f32.partialorder %v1357, 20.0
    %v1360 = vmin.f32 %v1357, 20.0
    %v1361 = vmul.f32 %v1360, 1.442695
    %v1362 = vpow.pop %v1361
    %v1363 = vadd.f32 %v1362, 1.0
    %v1364 = vlog2.pop %v1363
    %v1365 = vmul.f32 %v1364, 0.6931472
    %v1366 = vsel %vm1359, %v1357, %v1365
    %v1367 = vsel %vm728, %v1366, 0.0
    %s1368 = scalar_lea.vmem %s7, 40
    %1369 = vst [vmem:[%s1368] sm:$0xff] %v1367
    // Predicated region
    $region34: #{actor_forward.1} parent=1 // pred_check
      _
    $region35: #{actor_forward.1} parent=1 // pred_check_branch
      %1371 = sbr.rel (0) target = $region37
    $region36: #{actor_forward.1} parent=1 // pred_region
      _
    $region37: #{actor_forward.1} parent=1 // pred_fallthru
      _
    // Predicated region
    $region38: #{actor_forward.1} parent=1 // pred_check
      _
    $region39: #{actor_forward.1} parent=1 // pred_check_branch
      %1373 = sbr.rel (0) target = $region41
    $region40: #{actor_forward.1} parent=1 // pred_region
      _
    $region41: #{actor_forward.1} parent=1 // pred_fallthru
      _
    %1374 = vsyncpa [#allocation3], 1

</llo_original>
